<compile_context>
chip_gen: v5e
topology: v5e:2x2
jax: 0.10.0
libtpu: 0.0.40
codegen_flags: <defaults>
</compile_context>

<pallas_src>
from functools import partial

import jax
import jax.numpy as jnp
from jax.experimental import pallas as pl
from jax.experimental.pallas import tpu as pltpu

_LANE_ALIGN = 256  # MXU-native on v6e/v7x; a multiple of 128 so fine on v5e too.


def _round_up(v, m):
    return (v + m - 1) // m * m


def _pick_vmem_limit():
    """Per-generation VMEM budget: ~96 MiB on 128-MiB chips, ~48 MiB on v7x."""
    try:
        cap = int(pltpu.get_tpu_info().vmem_capacity_bytes)
    except Exception:
        return 48 * 1024 * 1024
    return int(max(32 * 1024 * 1024,
                   min(cap - 16 * 1024 * 1024, 96 * 1024 * 1024)))


def _pick_hidden_tile(d_pad, h_pad):
    """Hidden-dim tile: keep double-buffered bf16 weight tiles <= ~24 MiB."""
    if h_pad % 512 == 0 and 8 * d_pad * 512 <= 24 * 1024 * 1024:
        return 512
    return 256  # h_pad is always a multiple of 256


def prepare_expert_weights(w1, w2, align=_LANE_ALIGN):
    """One-time (model-load) pad + bf16 cast + MXU-native transpose.

    w1: [E, H, D] (F.linear layout) -> w1t: [E, Dp, Hp]
    w2: [E, D, H]                   -> w2t: [E, Hp, Dp]
    Zero padding is numerically transparent (gelu(0) == 0 exactly).
    """
    num_experts, hidden, d_in = w1.shape
    d_pad = _round_up(d_in, align)
    h_pad = _round_up(hidden, align)
    w1t = jnp.transpose(
        jnp.pad(w1, ((0, 0), (0, h_pad - hidden), (0, d_pad - d_in))),
        (0, 2, 1)).astype(jnp.bfloat16)
    w2t = jnp.transpose(
        jnp.pad(w2, ((0, 0), (0, d_pad - d_in), (0, h_pad - hidden))),
        (0, 2, 1)).astype(jnp.bfloat16)
    return w1t, w2t


def _grouped_mlp_kernel(e_ref, m_ref, r_ref, x_ref, g_ref, w1_ref, w2_ref,
                        o_ref, acc_ref):
    # e_ref (block->expert) and m_ref (block h-multiplier) drive the index_maps
    # only; r_ref[0] is the number of real (non pad-only) blocks.
    del e_ref, m_ref
    b = pl.program_id(0)
    h = pl.program_id(1)
    n_h = pl.num_programs(1)
    is_real = b < r_ref[0]

    @pl.when(is_real)
    def _():
        @pl.when(h == 0)
        def _():
            acc_ref[...] = jnp.zeros_like(acc_ref)

        x = x_ref[...]                         # [TN, Dp]  bf16
        w1 = w1_ref[...]                       # [Dp, TH]  bf16 (MXU-native [K,N])
        w2 = w2_ref[...]                       # [TH, Dp]  bf16 (MXU-native [K,N])

        ht = jnp.dot(x, w1, preferred_element_type=jnp.float32)   # [TN, TH] f32
        ht = jax.nn.gelu(ht, approximate=True).astype(jnp.bfloat16)
        acc_ref[...] += jnp.dot(ht, w2, preferred_element_type=jnp.float32)

        @pl.when(h == n_h - 1)
        def _():
            # routing gate, then bf16 store (halves output DMA).
            o_ref[...] = (g_ref[...] * acc_ref[...]).astype(o_ref.dtype)

    # Pad-only blocks: no compute; write zeros once so the output buffer never
    # holds stale VMEM (those rows are never gathered anyway).
    @pl.when(jnp.logical_and(jnp.logical_not(is_real), h == 0))
    def _():
        o_ref[...] = jnp.zeros_like(o_ref)


@partial(jax.jit, static_argnames=("tn",))
def moe_mlp_forward(x, expert_p, expert_idxs, w1t, w2t, *, tn=256):
    """x: [..., D_in]; expert_p/expert_idxs: [..., top_k];
    w1t/w2t: pre-padded, bf16, MXU-native weights from prepare_expert_weights.
    tn: token rows per block (256 feeds the 256x256 MXU on v6e/v7x fully)."""
    x_shape = x.shape
    d_in = x_shape[-1]
    num_experts, d_pad, h_pad = w1t.shape
    th = _pick_hidden_tile(d_pad, h_pad)
    n_h = h_pad // th

    x2 = x.reshape(-1, d_in)
    idx2 = expert_idxs.reshape(-1, expert_idxs.shape[-1]).astype(jnp.int32)
    p2 = expert_p.reshape(-1, expert_p.shape[-1]).astype(jnp.float32)
    n_tok, top_k = idx2.shape
    nk = n_tok * top_k

    x_p = jnp.pad(x2, ((0, 0), (0, d_pad - d_in))).astype(jnp.bfloat16)

    # ---- scatterMoE schedule: group (token, top-k slot) pairs by expert ----
    flat_exp = idx2.reshape(-1)                                    # [N*K]
    flat_tok = jnp.arange(nk, dtype=jnp.int32) // top_k
    flat_gate = p2.reshape(-1)

    order = jnp.argsort(flat_exp)
    sorted_exp = flat_exp[order]
    sorted_tok = flat_tok[order]
    sorted_gate = flat_gate[order]

    counts = jnp.bincount(flat_exp, length=num_experts).astype(jnp.int32)
    padded_counts = ((counts + tn - 1) // tn) * tn
    csum = jnp.cumsum(counts)
    pcsum = jnp.cumsum(padded_counts)
    off = jnp.concatenate([jnp.zeros(1, jnp.int32), csum[:-1]])
    poff = jnp.concatenate([jnp.zeros(1, jnp.int32), pcsum[:-1]])

    # grouped row of each sorted (token, slot) pair
    rank = jnp.arange(nk, dtype=jnp.int32) - off[sorted_exp]
    dest_row = (poff[sorted_exp] + rank).astype(jnp.int32)

    # static worst-case block count; only the first n_real carry real rows
    num_blocks = pl.cdiv(nk, tn) + num_experts
    rows = num_blocks * tn
    n_real = (pcsum[-1] // tn).astype(jnp.int32)

    block_start = jnp.arange(num_blocks, dtype=jnp.int32) * tn
    blk_expert = jnp.minimum(
        jnp.searchsorted(pcsum, block_start, side="right"),
        num_experts - 1).astype(jnp.int32)
    blk_is_real = jnp.arange(num_blocks, dtype=jnp.int32) < n_real
    # pad-only trailing blocks reuse the last real block's expert and h-tile 0,
    # so their (skipped) weight fetches collapse to an already-resident tile.
    last_e = blk_expert[jnp.maximum(n_real - 1, 0)]
    blk_expert = jnp.where(blk_is_real, blk_expert, last_e).astype(jnp.int32)
    blk_hmul = blk_is_real.astype(jnp.int32)

    # ---- grouped inputs built with gathers only (no XLA scatters) ----------
    row_ids = jnp.arange(rows, dtype=jnp.int32)
    row_e = jnp.minimum(jnp.searchsorted(pcsum, row_ids, side="right"),
                        num_experts - 1)
    row_rank = row_ids - poff[row_e]
    row_valid = row_rank < counts[row_e]
    src = jnp.clip(off[row_e] + row_rank, 0, nk - 1)
    row_tok = jnp.where(row_valid, sorted_tok[src], n_tok)      # n_tok -> zero row
    row_gate = jnp.where(row_valid, sorted_gate[src], 0.0)

    x_ext = jnp.concatenate([x_p, jnp.zeros((1, d_pad), x_p.dtype)], axis=0)
    x_grp = jnp.take(x_ext, row_tok, axis=0)                    # [rows, Dp] bf16
    g_grp = row_gate[:, None]                                   # [rows, 1]  f32

    grid_spec = pltpu.PrefetchScalarGridSpec(
        num_scalar_prefetch=3,            # block->expert, block h-mult, n_real
        grid=(num_blocks, n_h),
        in_specs=[
            pl.BlockSpec((tn, d_pad), lambda b, h, e, m, r: (b, 0)),
            pl.BlockSpec((tn, 1), lambda b, h, e, m, r: (b, 0)),
            pl.BlockSpec((pl.Squeezed(), d_pad, th),
                         lambda b, h, e, m, r: (e[b], 0, h * m[b])),
            pl.BlockSpec((pl.Squeezed(), th, d_pad),
                         lambda b, h, e, m, r: (e[b], h * m[b], 0)),
        ],
        out_specs=pl.BlockSpec((tn, d_pad), lambda b, h, e, m, r: (b, 0)),
        scratch_shapes=[pltpu.VMEM((tn, d_pad), jnp.float32)],
    )

    cost = pl.CostEstimate(
        flops=4 * nk * d_pad * h_pad,                  # two GEMMs per pair
        transcendentals=nk * h_pad,                    # gelu
        bytes_accessed=(2 * num_experts * d_pad * h_pad * 2   # bf16 weights
                        + 2 * rows * d_pad * 2                # x in + out bf16
                        + rows * 4),                          # gates
    )

    z_grp = pl.pallas_call(
        _grouped_mlp_kernel,
        out_shape=jax.ShapeDtypeStruct((rows, d_pad), jnp.bfloat16),
        grid_spec=grid_spec,
        compiler_params=pltpu.CompilerParams(
            dimension_semantics=("parallel", "arbitrary"),
            vmem_limit_bytes=_pick_vmem_limit()),
        cost_estimate=cost,
    )(blk_expert, blk_hmul, jnp.reshape(n_real, (1,)), x_grp, g_grp, w1t, w2t)

    # ---- un-permute with gathers + f32 top-k sum (no scatter-add) ----------
    inv_order = jnp.argsort(order)
    dest_by_flat = dest_row[inv_order]                            # [N*K]
    y = jnp.take(z_grp, dest_by_flat, axis=0).astype(jnp.float32)
    y = y.reshape(n_tok, top_k, d_pad).sum(axis=1)[:, :d_in]
    return y.reshape(*x_shape[:-1], d_in)


def _reference(x, expert_p, expert_idxs, w1, w2):
    """Pure-JAX reference with the same bf16-operand / f32-accumulate recipe."""
    d_in = x.shape[-1]
    x2 = x.reshape(-1, d_in).astype(jnp.bfloat16)
    idx2 = expert_idxs.reshape(-1, expert_idxs.shape[-1])
    p2 = expert_p.reshape(-1, expert_p.shape[-1]).astype(jnp.float32)
    w1b = w1.astype(jnp.bfloat16)[idx2]                 # [N, K, H, D]
    h = jnp.einsum('nd,nkhd->nkh', x2, w1b, preferred_element_type=jnp.float32)
    h = jax.nn.gelu(h, approximate=True).astype(jnp.bfloat16)
    w2b = w2.astype(jnp.bfloat16)[idx2]                 # [N, K, D, H]
    y = jnp.einsum('nkh,nkdh->nkd', h, w2b, preferred_element_type=jnp.float32)
    y = jnp.sum(y * p2[..., None], axis=1)
    return y.reshape(*x.shape[:-1], d_in)


if __name__ == "__main__":
    # small shapes consistent with the module
    batch, seq = 2, 8
    input_size, hidden_size = 32, 64
    num_experts, top_k = 4, 2

    key = jax.random.PRNGKey(0)
    k_x, k_w1, k_w2, k_router = jax.random.split(key, 4)

    x = jax.random.normal(k_x, (batch, seq, input_size), dtype=jnp.float32)

    # ParallelExperts weight shapes (F.linear layout)
    w1 = jax.random.normal(
        k_w1, (num_experts, hidden_size, input_size), dtype=jnp.float32
    ) * (1.0 / jnp.sqrt(input_size))
    w2 = jax.random.normal(
        k_w2, (num_experts, input_size, hidden_size), dtype=jnp.float32
    ) * (1.0 / jnp.sqrt(hidden_size))

    # router: top-k experts per token with softmax-normalized gate probs
    logits = jax.random.normal(
        k_router, (batch, seq, num_experts), dtype=jnp.float32)
    top_vals, expert_idxs = jax.lax.top_k(logits, top_k)
    expert_p = jax.nn.softmax(top_vals, axis=-1)

    # one-time model-load step (pad + bf16 + MXU-native transpose)
    w1t, w2t = prepare_expert_weights(w1, w2)

    y = moe_mlp_forward(x, expert_p, expert_idxs, w1t, w2t)
    jax.block_until_ready(y)

    y_ref = _reference(x, expert_p, expert_idxs, w1, w2)
    assert y.shape == (batch, seq, input_size)
    max_err = float(jnp.max(jnp.abs(y - y_ref)))
    assert jnp.allclose(y, y_ref, rtol=2e-2, atol=2e-2), (
        f"mismatch vs reference (max abs err {max_err})")

    print("KERNEL_OK")
</pallas_src>

<mosaic_0001>
module attributes {stable_mosaic.version = 11 : i64} {
  func.func @_grouped_mlp_kernel(%arg0: i32, %arg1: i32, %arg2: memref<5xi32, #tpu.memory_space<smem>>, %arg3: memref<5xi32, #tpu.memory_space<smem>>, %arg4: memref<1xi32, #tpu.memory_space<smem>>, %arg5: memref<256x256xbf16, #tpu.memory_space<vmem>>, %arg6: memref<256x1xf32, #tpu.memory_space<vmem>>, %arg7: memref<1x256x256xbf16, #tpu.memory_space<vmem>>, %arg8: memref<1x256x256xbf16, #tpu.memory_space<vmem>>, %arg9: memref<256x256xbf16, #tpu.memory_space<vmem>>, %arg10: memref<256x256xf32, #tpu.memory_space<vmem>>) attributes {dimension_semantics = [#tpu.dimension_semantics<parallel>, #tpu.dimension_semantics<arbitrary>], iteration_bounds = array<i64: 5, 1>, scalar_prefetch = 3 : i64, scratch_operands = 1 : i64, tpu.core_type = #tpu.core_type<tc>, window_params = [{transform_indices = @transform_0, window_bounds = array<i64: 256, 256>}, {transform_indices = @transform_1, window_bounds = array<i64: 256, 1>}, {transform_indices = @transform_2, window_bounds = array<i64: 1, 256, 256>}, {transform_indices = @transform_3, window_bounds = array<i64: 1, 256, 256>}, {transform_indices = @transform_4, window_bounds = array<i64: 256, 256>}]} {
    %c0 = arith.constant 0 : index
    %0 = memref.load %arg4[%c0] : memref<1xi32, #tpu.memory_space<smem>>
    %1 = arith.cmpi slt, %arg0, %0 : i32
    %2 = arith.extui %1 : i1 to i32
    %c0_i32 = arith.constant 0 : i32
    %3 = arith.cmpi ne, %2, %c0_i32 : i32
    scf.if %3 {
      %c0_i32_2 = arith.constant 0 : i32
      %9 = arith.cmpi eq, %arg1, %c0_i32_2 : i32
      %10 = arith.extui %9 : i1 to i32
      %c0_i32_3 = arith.constant 0 : i32
      %11 = arith.cmpi ne, %10, %c0_i32_3 : i32
      scf.if %11 {
        %cst_23 = arith.constant 0.000000e+00 : f32
        %39 = vector.broadcast %cst_23 : f32 to vector<256x256xf32>
        %c0_24 = arith.constant 0 : index
        %c0_25 = arith.constant 0 : index
        %40 = vector.load %arg10[%c0_24, %c0_25] : memref<256x256xf32, #tpu.memory_space<vmem>>, vector<256x256xf32>
        tpu.vector_store %arg10[%c0_24, %c0_25], %39 {strides = array<i32>} : memref<256x256xf32, #tpu.memory_space<vmem>>, vector<256x256xf32>,
      } else {
      }
      %c0_4 = arith.constant 0 : index
      %c0_5 = arith.constant 0 : index
      %12 = vector.load %arg5[%c0_4, %c0_5] : memref<256x256xbf16, #tpu.memory_space<vmem>>, vector<256x256xbf16>
      %c0_6 = arith.constant 0 : index
      %c0_7 = arith.constant 0 : index
      %c0_8 = arith.constant 0 : index
      %13 = vector.load %arg7[%c0_6, %c0_7, %c0_8] : memref<1x256x256xbf16, #tpu.memory_space<vmem>>, vector<1x256x256xbf16>
      %14 = vector.shape_cast %13 : vector<1x256x256xbf16> to vector<256x256xbf16>
      %c0_9 = arith.constant 0 : index
      %c0_10 = arith.constant 0 : index
      %c0_11 = arith.constant 0 : index
      %15 = vector.load %arg8[%c0_9, %c0_10, %c0_11] : memref<1x256x256xbf16, #tpu.memory_space<vmem>>, vector<1x256x256xbf16>
      %16 = vector.shape_cast %15 : vector<1x256x256xbf16> to vector<256x256xbf16>
      %cst = arith.constant dense<0.000000e+00> : vector<256x256xf32>
      %17 = tpu.matmul %12, %14, %cst {dimension_numbers = #tpu.dot_dimension_numbers<[1], [0], [0], [1], [0, 0, 1, 1], [], []>} : vector<256x256xbf16>, vector<256x256xbf16>, vector<256x256xf32> -> vector<256x256xf32>
      %18 = arith.mulf %17, %17 : vector<256x256xf32>
      %19 = arith.mulf %17, %18 : vector<256x256xf32>
      %cst_12 = arith.constant 4.471500e-02 : f32
      %20 = vector.broadcast %cst_12 : f32 to vector<256x256xf32>
      %21 = arith.mulf %20, %19 : vector<256x256xf32>
      %22 = arith.addf %17, %21 : vector<256x256xf32>
      %cst_13 = arith.constant 0.797884583 : f32
      %23 = vector.broadcast %cst_13 : f32 to vector<256x256xf32>
      %24 = arith.mulf %23, %22 : vector<256x256xf32>
      %25 = math.tanh %24 : vector<256x256xf32>
      %cst_14 = arith.constant 1.000000e+00 : f32
      %26 = vector.broadcast %cst_14 : f32 to vector<256x256xf32>
      %27 = arith.addf %26, %25 : vector<256x256xf32>
      %cst_15 = arith.constant 5.000000e-01 : f32
      %28 = vector.broadcast %cst_15 : f32 to vector<256x256xf32>
      %29 = arith.mulf %28, %27 : vector<256x256xf32>
      %30 = arith.mulf %17, %29 : vector<256x256xf32>
      %31 = arith.truncf %30 : vector<256x256xf32> to vector<256x256xbf16>
      %c0_16 = arith.constant 0 : index
      %c0_17 = arith.constant 0 : index
      %32 = vector.load %arg10[%c0_16, %c0_17] : memref<256x256xf32, #tpu.memory_space<vmem>>, vector<256x256xf32>
      %cst_18 = arith.constant dense<0.000000e+00> : vector<256x256xf32>
      %33 = tpu.matmul %31, %16, %cst_18 {dimension_numbers = #tpu.dot_dimension_numbers<[1], [0], [0], [1], [0, 0, 1, 1], [], []>} : vector<256x256xbf16>, vector<256x256xbf16>, vector<256x256xf32> -> vector<256x256xf32>
      %34 = arith.addf %32, %33 : vector<256x256xf32>
      %c0_19 = arith.constant 0 : index
      %c0_20 = arith.constant 0 : index
      %35 = vector.load %arg10[%c0_19, %c0_20] : memref<256x256xf32, #tpu.memory_space<vmem>>, vector<256x256xf32>
      tpu.vector_store %arg10[%c0_19, %c0_20], %34 {strides = array<i32>} : memref<256x256xf32, #tpu.memory_space<vmem>>, vector<256x256xf32>,
      %c0_i32_21 = arith.constant 0 : i32
      %36 = arith.cmpi eq, %arg1, %c0_i32_21 : i32
      %37 = arith.extui %36 : i1 to i32
      %c0_i32_22 = arith.constant 0 : i32
      %38 = arith.cmpi ne, %37, %c0_i32_22 : i32
      scf.if %38 {
        %c0_23 = arith.constant 0 : index
        %c0_24 = arith.constant 0 : index
        %39 = vector.load %arg6[%c0_23, %c0_24] : memref<256x1xf32, #tpu.memory_space<vmem>>, vector<256x1xf32>
        %c0_25 = arith.constant 0 : index
        %c0_26 = arith.constant 0 : index
        %40 = vector.load %arg10[%c0_25, %c0_26] : memref<256x256xf32, #tpu.memory_space<vmem>>, vector<256x256xf32>
        %41 = vector.broadcast %39 : vector<256x1xf32> to vector<256x256xf32>
        %42 = arith.mulf %41, %40 : vector<256x256xf32>
        %43 = arith.truncf %42 : vector<256x256xf32> to vector<256x256xbf16>
        %c0_27 = arith.constant 0 : index
        %c0_28 = arith.constant 0 : index
        %44 = vector.load %arg9[%c0_27, %c0_28] : memref<256x256xbf16, #tpu.memory_space<vmem>>, vector<256x256xbf16>
        tpu.vector_store %arg9[%c0_27, %c0_28], %43 {strides = array<i32>} : memref<256x256xbf16, #tpu.memory_space<vmem>>, vector<256x256xbf16>,
      } else {
      }
    } else {
    }
    %true = arith.constant true
    %4 = arith.xori %1, %true : i1
    %c0_i32_0 = arith.constant 0 : i32
    %5 = arith.cmpi eq, %arg1, %c0_i32_0 : i32
    %6 = arith.andi %4, %5 : i1
    %7 = arith.extui %6 : i1 to i32
    %c0_i32_1 = arith.constant 0 : i32
    %8 = arith.cmpi ne, %7, %c0_i32_1 : i32
    scf.if %8 {
      %cst = arith.constant 0.000000e+00 : bf16
      %9 = vector.broadcast %cst : bf16 to vector<256x256xbf16>
      %c0_2 = arith.constant 0 : index
      %c0_3 = arith.constant 0 : index
      %10 = vector.load %arg9[%c0_2, %c0_3] : memref<256x256xbf16, #tpu.memory_space<vmem>>, vector<256x256xbf16>
      tpu.vector_store %arg9[%c0_2, %c0_3], %9 {strides = array<i32>} : memref<256x256xbf16, #tpu.memory_space<vmem>>, vector<256x256xbf16>,
    } else {
    }
    return
  }
  func.func @transform_0(%arg0: i32, %arg1: i32, %arg2: memref<5xi32, #tpu.memory_space<smem>>, %arg3: memref<5xi32, #tpu.memory_space<smem>>, %arg4: memref<1xi32, #tpu.memory_space<smem>>) -> (i32, i32) {
    %c0_i32 = arith.constant 0 : i32
    %c0_i32_0 = arith.constant 0 : i32
    return %arg0, %c0_i32 : i32, i32
  }
  func.func @transform_1(%arg0: i32, %arg1: i32, %arg2: memref<5xi32, #tpu.memory_space<smem>>, %arg3: memref<5xi32, #tpu.memory_space<smem>>, %arg4: memref<1xi32, #tpu.memory_space<smem>>) -> (i32, i32) {
    %c0_i32 = arith.constant 0 : i32
    %c0_i32_0 = arith.constant 0 : i32
    return %arg0, %c0_i32 : i32, i32
  }
  func.func @transform_2(%arg0: i32, %arg1: i32, %arg2: memref<5xi32, #tpu.memory_space<smem>>, %arg3: memref<5xi32, #tpu.memory_space<smem>>, %arg4: memref<1xi32, #tpu.memory_space<smem>>) -> (i32, i32, i32) {
    %0 = arith.index_cast %arg0 : i32 to index
    %1 = memref.load %arg2[%0] : memref<5xi32, #tpu.memory_space<smem>>
    %2 = arith.index_cast %arg0 : i32 to index
    %3 = memref.load %arg3[%2] : memref<5xi32, #tpu.memory_space<smem>>
    %4 = arith.muli %arg1, %3 : i32
    %c0_i32 = arith.constant 0 : i32
    %c0_i32_0 = arith.constant 0 : i32
    return %1, %c0_i32, %4 : i32, i32, i32
  }
  func.func @transform_3(%arg0: i32, %arg1: i32, %arg2: memref<5xi32, #tpu.memory_space<smem>>, %arg3: memref<5xi32, #tpu.memory_space<smem>>, %arg4: memref<1xi32, #tpu.memory_space<smem>>) -> (i32, i32, i32) {
    %0 = arith.index_cast %arg0 : i32 to index
    %1 = memref.load %arg2[%0] : memref<5xi32, #tpu.memory_space<smem>>
    %2 = arith.index_cast %arg0 : i32 to index
    %3 = memref.load %arg3[%2] : memref<5xi32, #tpu.memory_space<smem>>
    %4 = arith.muli %arg1, %3 : i32
    %c0_i32 = arith.constant 0 : i32
    %c0_i32_0 = arith.constant 0 : i32
    return %1, %4, %c0_i32 : i32, i32, i32
  }
  func.func @transform_4(%arg0: i32, %arg1: i32, %arg2: memref<5xi32, #tpu.memory_space<smem>>, %arg3: memref<5xi32, #tpu.memory_space<smem>>, %arg4: memref<1xi32, #tpu.memory_space<smem>>) -> (i32, i32) {
    %c0_i32 = arith.constant 0 : i32
    %c0_i32_0 = arith.constant 0 : i32
    return %arg0, %c0_i32 : i32, i32
  }
}

</mosaic_0001>

<llo_original>
// kernel: custom-call.1
$region0: #{custom-call.1}
  %s0 = inlined_call_operand.vmem [shape: u32[5], index: 0, kind: output, shape index: {}]

// kernel: custom-call.3
$region0: #{custom-call.3}
  %s0 = inlined_call_operand.vmem [shape: u32[1280], index: 0, kind: output, shape index: {}]

// kernel: moe_mlp_forward.1
$region0: #{moe_mlp_forward.1}
  #allocation0 [shape = 'u32[]', space=smem, size = 0x4, offset = 0x4, fixed_abs, tag = 'smem constant byte address 0x4 - core index']
  #allocation1 [shape = 'u32[72,128]{1,0:T(1,128)}', space=vmem, size = 0x9000, scoped, tag = 'internal scratch']
  #allocation2 [shape = 'f32[256,256]{1,0:T(8,128)}', space=vmem, size = 0x40000, scoped, tag = 'scratch operand']
  #allocation3 [shape = 's32[1]{0}', space=sflag, size = 0x4, scoped, tag = 'scoped memory for moe_mlp_forward.1']
  #allocation4 [shape = 'u8[512]{0}', space=smem, size = 0x200, scoped, tag = 'prefetched SMEM operand 0']
  #allocation5 [shape = 'u8[512]{0}', space=smem, size = 0x200, scoped, tag = 'prefetched SMEM operand 1']
  #allocation6 [shape = 's32[1]{0:T(128)S(6)}', space=smem, size = 0x200, scoped, tag = 'prefetched SMEM operand 2']
  %s0 = inlined_call_operand.vmem [shape: s32[5], index: 0, kind: input, shape index: {}]
  %s1 = inlined_call_operand.vmem [shape: s32[5], index: 1, kind: input, shape index: {}]
  %s2 = inlined_call_operand.<no memory space> [shape: s32[1], index: 2, kind: input, shape index: {}]
  %s3 = inlined_call_operand.vmem [shape: bf16[1280,256], index: 3, kind: input, shape index: {}]
  %s4 = inlined_call_operand.vmem [shape: f32[1280,1], index: 4, kind: input, shape index: {}]
  %s5 = inlined_call_operand.vmem [shape: bf16[4,256,256], index: 5, kind: input, shape index: {}]
  %s6 = inlined_call_operand.vmem [shape: bf16[4,256,256], index: 6, kind: input, shape index: {}]
  %s7 = inlined_call_operand.vmem [shape: bf16[1280,256], index: 7, kind: output, shape index: {}]
  %s8 = sld [smem:[#allocation0]]
  $region65: #{moe_mlp_forward.1} parent=0
    _
  %s10 = ssub.s32 1, %s8
  %s11 = scalar_select 0, %s10, %s8
  %s13 = sshll.u32 %s0, 4
  %s14 = int_to_ptr.vmem [resolvable:$true] %s13
  %16 = dma.vmem_to_smem %s14, 16, [#allocation4], [#allocation3]
  %s18 = sshll.u32 %s1, 4
  %s19 = int_to_ptr.vmem [resolvable:$true] %s18
  %21 = dma.vmem_to_smem %s19, 16, [#allocation5], [#allocation3]
  %22 = sst [smem:[#allocation6]] %s2
  %24 = dma.done [#allocation3], 32
  %25 = sfence
  loop: start=0, step=1, limit=7
  $region2: #{moe_mlp_forward.1} parent=0 // loop_pre_header
    _
  $region3: #{moe_mlp_forward.1} parent=0 // loop_header
    %s27 = sphi 0, %s31
    %p28 = scmp.ge.s32.totalorder %s27, 7
    %s34 = sphi 0, %s46
    %s35 = sphi 0, %s42
    %s36 = sphi 0, %s34
    %s37 = sphi 0, %s35
    %s38 = sphi 0, %s36
    %s39 = sphi 0, %s37
    %s49 = sphi 0, %s51
    %s52 = sphi 0, %s49
    %s53 = sphi 0, %s52
    %s69 = sphi 0, %s53
    %s75 = sphi 0, %s77
    %s78 = sphi 0, %s75
    %s79 = sphi 0, %s78
    %s95 = sphi 0, %s79
    %s109 = sphi 0, %s111
    %s112 = sphi 0, %s109
    %s113 = sphi 0, %s112
    %s129 = sphi 0, %s113
    %s143 = sphi 0, %s145
    %s146 = sphi 0, %s143
    %s147 = sphi 0, %s146
    %s163 = sphi 0, %s147
    %s169 = sphi 0, %s171
    %s172 = sphi 0, %s169
    %s173 = sphi 0, %s172
    %s189 = sphi 0, %s173
  $region4: #{moe_mlp_forward.1} parent=0 // loop_header_branch
    %30 = sbr.rel (%p28) target = $region8
  $region5: #{moe_mlp_forward.1} parent=0 // loop_body
    %s32 = ssub.s32 %s27, 1
    %s33 = ssub.s32 %s27, 2
    %s40 = sadd.s32 1, %s35
    %p41 = scmp.ge.s32.totalorder %s40, 1
    %s42 = scalar_select %p41, 0, %s40
    %s43 = sadd.s32 1, %s34
    %s44 = scalar_select %p41, %s43, %s34
    %p45 = scmp.ge.s32.totalorder %s44, 5
    %s46 = scalar_select %p45, 0, %s44
    %s47 = ssub.s32 %s34, %s46
    %p48 = scmp.eq.s32.totalorder %s47, 0
    %s50 = sadd.s32 %s49, 1
    %s51 = scalar_select %p48, %s49, %s50
    %p54 = pneg %p48
    %p55 = scmp.eq.s32.totalorder %s27, 4
    %p56 = por %p54, %p55
    %p57 = scmp.ne.s32.totalorder %s49, %s52
    %p58 = scmp.eq.s32.totalorder %s27, 0
    %p59 = por %p57, %p58
    %p60 = scmp.ne.s32.totalorder %s49, %s52
    %p61 = scmp.eq.s32.totalorder %s32, 4
    %p62 = por %p60, %p61
    %p63 = scmp.ne.s32.totalorder %s52, %s53
    %p64 = scmp.eq.s32.totalorder %s32, 0
    %p65 = por %p63, %p64
    %p66 = scmp.ne.s32.totalorder %s52, %s53
    %p67 = scmp.eq.s32.totalorder %s33, 4
    %p68 = por %p66, %p67
    %p70 = scmp.ne.s32.totalorder %s53, %s69
    %p71 = scmp.eq.s32.totalorder %s33, 0
    %p72 = por %p70, %p71
    %s73 = ssub.s32 %s34, %s46
    %p74 = scmp.eq.s32.totalorder %s73, 0
    %s76 = sadd.s32 %s75, 1
    %s77 = scalar_select %p74, %s75, %s76
    %p80 = pneg %p74
    %p81 = scmp.eq.s32.totalorder %s27, 4
    %p82 = por %p80, %p81
    %p83 = scmp.ne.s32.totalorder %s75, %s78
    %p84 = scmp.eq.s32.totalorder %s27, 0
    %p85 = por %p83, %p84
    %p86 = scmp.ne.s32.totalorder %s75, %s78
    %p87 = scmp.eq.s32.totalorder %s32, 4
    %p88 = por %p86, %p87
    %p89 = scmp.ne.s32.totalorder %s78, %s79
    %p90 = scmp.eq.s32.totalorder %s32, 0
    %p91 = por %p89, %p90
    %p92 = scmp.ne.s32.totalorder %s78, %s79
    %p93 = scmp.eq.s32.totalorder %s33, 4
    %p94 = por %p92, %p93
    %p96 = scmp.ne.s32.totalorder %s79, %s95
    %p97 = scmp.eq.s32.totalorder %s33, 0
    %p98 = por %p96, %p97
    %s99 = sld [smem:[#allocation4 + %s34]]
    %s100 = sld [smem:[#allocation5 + %s34]]
    %s101 = smul.u32 %s35, %s100
    %s102 = sld [smem:[#allocation4 + %s46]]
    %s103 = sld [smem:[#allocation5 + %s46]]
    %s104 = smul.u32 %s42, %s103
    %s105 = ssub.s32 %s99, %s102
    %s106 = ssub.s32 %s101, %s104
    %s107 = sor.u32 %s105, %s106
    %p108 = scmp.eq.s32.totalorder %s107, 0
    %s110 = sadd.s32 %s109, 1
    %s111 = scalar_select %p108, %s109, %s110
    %p114 = pneg %p108
    %p115 = scmp.eq.s32.totalorder %s27, 4
    %p116 = por %p114, %p115
    %p117 = scmp.ne.s32.totalorder %s109, %s112
    %p118 = scmp.eq.s32.totalorder %s27, 0
    %p119 = por %p117, %p118
    %p120 = scmp.ne.s32.totalorder %s109, %s112
    %p121 = scmp.eq.s32.totalorder %s32, 4
    %p122 = por %p120, %p121
    %p123 = scmp.ne.s32.totalorder %s112, %s113
    %p124 = scmp.eq.s32.totalorder %s32, 0
    %p125 = por %p123, %p124
    %p126 = scmp.ne.s32.totalorder %s112, %s113
    %p127 = scmp.eq.s32.totalorder %s33, 4
    %p128 = por %p126, %p127
    %p130 = scmp.ne.s32.totalorder %s113, %s129
    %p131 = scmp.eq.s32.totalorder %s33, 0
    %p132 = por %p130, %p131
    %s133 = sld [smem:[#allocation4 + %s34]]
    %s134 = sld [smem:[#allocation5 + %s34]]
    %s135 = smul.u32 %s35, %s134
    %s136 = sld [smem:[#allocation4 + %s46]]
    %s137 = sld [smem:[#allocation5 + %s46]]
    %s138 = smul.u32 %s42, %s137
    %s139 = ssub.s32 %s133, %s136
    %s140 = ssub.s32 %s135, %s138
    %s141 = sor.u32 %s139, %s140
    %p142 = scmp.eq.s32.totalorder %s141, 0
    %s144 = sadd.s32 %s143, 1
    %s145 = scalar_select %p142, %s143, %s144
    %p148 = pneg %p142
    %p149 = scmp.eq.s32.totalorder %s27, 4
    %p150 = por %p148, %p149
    %p151 = scmp.ne.s32.totalorder %s143, %s146
    %p152 = scmp.eq.s32.totalorder %s27, 0
    %p153 = por %p151, %p152
    %p154 = scmp.ne.s32.totalorder %s143, %s146
    %p155 = scmp.eq.s32.totalorder %s32, 4
    %p156 = por %p154, %p155
    %p157 = scmp.ne.s32.totalorder %s146, %s147
    %p158 = scmp.eq.s32.totalorder %s32, 0
    %p159 = por %p157, %p158
    %p160 = scmp.ne.s32.totalorder %s146, %s147
    %p161 = scmp.eq.s32.totalorder %s33, 4
    %p162 = por %p160, %p161
    %p164 = scmp.ne.s32.totalorder %s147, %s163
    %p165 = scmp.eq.s32.totalorder %s33, 0
    %p166 = por %p164, %p165
    %s167 = ssub.s32 %s34, %s46
    %p168 = scmp.eq.s32.totalorder %s167, 0
    %s170 = sadd.s32 %s169, 1
    %s171 = scalar_select %p168, %s169, %s170
    %p174 = pneg %p168
    %p175 = scmp.eq.s32.totalorder %s27, 4
    %p176 = por %p174, %p175
    %p177 = scmp.ne.s32.totalorder %s169, %s172
    %p178 = scmp.eq.s32.totalorder %s27, 0
    %p179 = por %p177, %p178
    %p180 = scmp.ne.s32.totalorder %s169, %s172
    %p181 = scmp.eq.s32.totalorder %s32, 4
    %p182 = por %p180, %p181
    %p183 = scmp.ne.s32.totalorder %s172, %s173
    %p184 = scmp.eq.s32.totalorder %s32, 0
    %p185 = por %p183, %p184
    %p186 = scmp.ne.s32.totalorder %s172, %s173
    %p187 = scmp.eq.s32.totalorder %s33, 4
    %p188 = por %p186, %p187
    %p190 = scmp.ne.s32.totalorder %s173, %s189
    %p191 = scmp.eq.s32.totalorder %s33, 0
    %p192 = por %p190, %p191
    %p193 = scmp.le.s32.totalorder 1, %s27
    %p194 = scmp.lt.s32.totalorder %s27, 6
    %p195 = pnand %p193, %p194
    %p196 = pneg %p195
    // Predicated region
    $region9: #{moe_mlp_forward.1} parent=5 // pred_check
      _
    $region10: #{moe_mlp_forward.1} parent=5 // pred_check_branch
      %198 = sbr.rel (%p195) target = $region12
    $region11: #{moe_mlp_forward.1} parent=5 // pred_region
      %s199 = ssub.s32 %s27, 1
    $region12: #{moe_mlp_forward.1} parent=5 // pred_fallthru
      _
    %p200 = scmp.lt.s32.totalorder %s27, 5
    // Predicated region
    $region13: #{moe_mlp_forward.1} parent=5 // pred_check
      %p201 = pneg %p200
    $region14: #{moe_mlp_forward.1} parent=5 // pred_check_branch
      %203 = sbr.rel (%p201) target = $region16
    $region15: #{moe_mlp_forward.1} parent=5 // pred_region
      // Predicated region
      $region17: #{moe_mlp_forward.1} parent=15 // pred_check
        %p204 = pneg %p59
      $region18: #{moe_mlp_forward.1} parent=15 // pred_check_branch
        %206 = sbr.rel (%p204) target = $region20
      $region19: #{moe_mlp_forward.1} parent=15 // pred_region
        %s207 = smul.u32 32, %s34
        %p208 = scmp.lt.s32.totalorder %s207, 159
        %s209 = scalar_select %p208, %s207, 159
        %s210 = smul.addr %s209, 2
        %s211 = smul.addr %s210, 4
        %s212 = scalar_lea.vmem %s3, %s211
        %s213 = smul.u32 32, %s34
      $region20: #{moe_mlp_forward.1} parent=15 // pred_fallthru
        _
      // Predicated region
      $region21: #{moe_mlp_forward.1} parent=15 // pred_check
        %p214 = pneg %p85
      $region22: #{moe_mlp_forward.1} parent=15 // pred_check_branch
        %216 = sbr.rel (%p214) target = $region24
      $region23: #{moe_mlp_forward.1} parent=15 // pred_region
        %s217 = smul.u32 32, %s34
        %p218 = scmp.lt.s32.totalorder %s217, 159
        %s219 = scalar_select %p218, %s217, 159
        %s220 = smul.addr %s219, 8
        %s221 = scalar_lea.vmem %s4, %s220
        %s222 = smul.u32 32, %s34
      $region24: #{moe_mlp_forward.1} parent=15 // pred_fallthru
        _
      // Predicated region
      $region25: #{moe_mlp_forward.1} parent=15 // pred_check
        %p223 = pneg %p119
      $region26: #{moe_mlp_forward.1} parent=15 // pred_check_branch
        %225 = sbr.rel (%p223) target = $region28
      $region27: #{moe_mlp_forward.1} parent=15 // pred_region
        %s226 = sld [smem:[#allocation4 + %s34]]
        %s227 = sld [smem:[#allocation5 + %s34]]
        %s228 = smul.u32 %s35, %s227
        %s229 = smul.u32 2, %s228
        %p230 = scmp.lt.s32.totalorder %s226, 3
        %s231 = scalar_select %p230, %s226, 3
        %p232 = scmp.lt.s32.totalorder %s229, 1
        %s233 = scalar_select %p232, %s229, 1
        %s234 = smul.addr %s231, 64
        %s235 = sadd.s32 %s233, %s234
        %s236 = smul.addr %s235, 4
        %s237 = scalar_lea.vmem %s5, %s236
        %s238 = sld [smem:[#allocation4 + %s34]]
        %s239 = sld [smem:[#allocation5 + %s34]]
        %s240 = smul.u32 %s35, %s239
        %s241 = smul.u32 2, %s240
      $region28: #{moe_mlp_forward.1} parent=15 // pred_fallthru
        _
      // Predicated region
      $region29: #{moe_mlp_forward.1} parent=15 // pred_check
        %p242 = pneg %p153
      $region30: #{moe_mlp_forward.1} parent=15 // pred_check_branch
        %244 = sbr.rel (%p242) target = $region32
      $region31: #{moe_mlp_forward.1} parent=15 // pred_region
        %s245 = sld [smem:[#allocation4 + %s34]]
        %s246 = sld [smem:[#allocation5 + %s34]]
        %s247 = smul.u32 %s35, %s246
        %s248 = smul.u32 32, %s247
        %p249 = scmp.lt.s32.totalorder %s245, 3
        %s250 = scalar_select %p249, %s245, 3
        %p251 = scmp.lt.s32.totalorder %s248, 31
        %s252 = scalar_select %p251, %s248, 31
        %s253 = smul.addr %s252, 2
        %s254 = smul.addr %s250, 64
        %s255 = sadd.s32 %s253, %s254
        %s256 = smul.addr %s255, 4
        %s257 = scalar_lea.vmem %s6, %s256
        %s258 = sld [smem:[#allocation4 + %s34]]
        %s259 = sld [smem:[#allocation5 + %s34]]
        %s260 = smul.u32 %s35, %s259
        %s261 = smul.u32 32, %s260
      $region32: #{moe_mlp_forward.1} parent=15 // pred_fallthru
        _
    $region16: #{moe_mlp_forward.1} parent=5 // pred_fallthru
      _
    %p262 = scmp.le.s32.totalorder 1, %s27
    %p263 = scmp.lt.s32.totalorder %s27, 6
    %p264 = pnand %p262, %p263
    %p265 = pneg %p264
    // Predicated region
    $region33: #{moe_mlp_forward.1} parent=5 // pred_check
      _
    $region34: #{moe_mlp_forward.1} parent=5 // pred_check_branch
      %267 = sbr.rel (%p264) target = $region36
    $region35: #{moe_mlp_forward.1} parent=5 // pred_region
      %s268 = ssub.s32 %s27, 1
      %s269 = smul.u32 32, %s36
      %p270 = scmp.lt.s32.totalorder %s269, 159
      %s271 = scalar_select %p270, %s269, 159
      %s272 = smul.addr %s271, 2
      %s273 = smul.addr %s272, 4
      %s274 = scalar_lea.vmem %s3, %s273
      %p275 = pneg %p65
      %p276 = pneg %p62
      %s277 = smul.u32 32, %s36
      %p278 = scmp.lt.s32.totalorder %s277, 159
      %s279 = scalar_select %p278, %s277, 159
      %s280 = smul.addr %s279, 8
      %s281 = scalar_lea.vmem %s4, %s280
      %p282 = pneg %p91
      %p283 = pneg %p88
      %s284 = sld [smem:[#allocation4 + %s36]]
      %s285 = sld [smem:[#allocation5 + %s36]]
      %s286 = smul.u32 %s37, %s285
      %s287 = smul.u32 2, %s286
      %p288 = scmp.lt.s32.totalorder %s284, 3
      %s289 = scalar_select %p288, %s284, 3
      %p290 = scmp.lt.s32.totalorder %s287, 1
      %s291 = scalar_select %p290, %s287, 1
      %s292 = smul.addr %s289, 64
      %s293 = sadd.s32 %s291, %s292
      %s294 = smul.addr %s293, 4
      %s295 = scalar_lea.vmem %s5, %s294
      %p296 = pneg %p125
      %p297 = pneg %p122
      %s298 = sld [smem:[#allocation4 + %s36]]
      %s299 = sld [smem:[#allocation5 + %s36]]
      %s300 = smul.u32 %s37, %s299
      %s301 = smul.u32 32, %s300
      %p302 = scmp.lt.s32.totalorder %s298, 3
      %s303 = scalar_select %p302, %s298, 3
      %p304 = scmp.lt.s32.totalorder %s301, 31
      %s305 = scalar_select %p304, %s301, 31
      %s306 = smul.addr %s305, 2
      %s307 = smul.addr %s303, 64
      %s308 = sadd.s32 %s306, %s307
      %s309 = smul.addr %s308, 4
      %s310 = scalar_lea.vmem %s6, %s309
      %p311 = pneg %p159
      %p312 = pneg %p156
      %p313 = pneg %p185
      %p314 = pneg %p182
      %s315 = smul.u32 32, %s36
      %p316 = scmp.lt.s32.totalorder %s315, 159
      %s317 = scalar_select %p316, %s315, 159
      %s318 = smul.addr %s317, 2
      %s319 = smul.addr %s318, 4
      %s320 = scalar_lea.vmem %s7, %s319
      %s321 = smul.u32 32, %s36
      %p322 = scmp.lt.s32.totalorder %s321, 159
      %s323 = scalar_select %p322, %s321, 159
      %s324 = smul.addr %s323, 2
      %s325 = smul.addr %s324, 4
      %s326 = scalar_lea.vmem %s3, %s325
      %s327 = smul.u32 32, %s36
      %s328 = smul.u32 32, %s36
      %p329 = scmp.lt.s32.totalorder %s328, 159
      %s330 = scalar_select %p329, %s328, 159
      %s331 = smul.addr %s330, 8
      %s332 = scalar_lea.vmem %s4, %s331
      %s333 = smul.u32 32, %s36
      %s334 = sld [smem:[#allocation4 + %s36]]
      %s335 = sld [smem:[#allocation5 + %s36]]
      %s336 = smul.u32 %s37, %s335
      %s337 = smul.u32 2, %s336
      %p338 = scmp.lt.s32.totalorder %s334, 3
      %s339 = scalar_select %p338, %s334, 3
      %p340 = scmp.lt.s32.totalorder %s337, 1
      %s341 = scalar_select %p340, %s337, 1
      %s342 = smul.addr %s339, 64
      %s343 = sadd.s32 %s341, %s342
      %s344 = smul.addr %s343, 4
      %s345 = scalar_lea.vmem %s5, %s344
      %s346 = sld [smem:[#allocation4 + %s36]]
      %s347 = sld [smem:[#allocation5 + %s36]]
      %s348 = smul.u32 %s37, %s347
      %s349 = smul.u32 2, %s348
      %s350 = sld [smem:[#allocation4 + %s36]]
      %s351 = sld [smem:[#allocation5 + %s36]]
      %s352 = smul.u32 %s37, %s351
      %s353 = smul.u32 32, %s352
      %p354 = scmp.lt.s32.totalorder %s350, 3
      %s355 = scalar_select %p354, %s350, 3
      %p356 = scmp.lt.s32.totalorder %s353, 31
      %s357 = scalar_select %p356, %s353, 31
      %s358 = smul.addr %s357, 2
      %s359 = smul.addr %s355, 64
      %s360 = sadd.s32 %s358, %s359
      %s361 = smul.addr %s360, 4
      %s362 = scalar_lea.vmem %s6, %s361
      %s363 = sld [smem:[#allocation4 + %s36]]
      %s364 = sld [smem:[#allocation5 + %s36]]
      %s365 = smul.u32 %s37, %s364
      %s366 = smul.u32 32, %s365
      %s367 = smul.u32 32, %s36
      %p368 = scmp.lt.s32.totalorder %s367, 159
      %s369 = scalar_select %p368, %s367, 159
      %s370 = smul.addr %s369, 2
      %s371 = smul.addr %s370, 4
      %s372 = scalar_lea.vmem %s7, %s371
      %s373 = smul.u32 32, %s36
      %s375 = sld [smem:[#allocation6]]
      %p376 = scmp.lt.s32.totalorder %s36, %s375
      // Predicated region
      $region37: #{moe_mlp_forward.1} parent=35 // pred_check
        %p377 = pneg %p376
      $region38: #{moe_mlp_forward.1} parent=35 // pred_check_branch
        %379 = sbr.rel (%p377) target = $region40
      $region39: #{moe_mlp_forward.1} parent=35 // pred_region
        %p380 = scmp.eq.s32.totalorder %s37, 0
        // Predicated region
        $region41: #{moe_mlp_forward.1} parent=39 // pred_check
          %p381 = pneg %p380
        $region42: #{moe_mlp_forward.1} parent=39 // pred_check_branch
          %383 = sbr.rel (%p381) target = $region44
        $region43: #{moe_mlp_forward.1} parent=39 // pred_region
          %384 = vst [vmem:[#allocation2] sm:$0xff] 0.0
          %385 = vst [vmem:[#allocation2 + $0x8] sm:$0xff] 0.0
          %386 = vst [vmem:[#allocation2 + $0x10] sm:$0xff] 0.0
          %387 = vst [vmem:[#allocation2 + $0x18] sm:$0xff] 0.0
          %388 = vst [vmem:[#allocation2 + $0x20] sm:$0xff] 0.0
          %389 = vst [vmem:[#allocation2 + $0x28] sm:$0xff] 0.0
          %390 = vst [vmem:[#allocation2 + $0x30] sm:$0xff] 0.0
          %391 = vst [vmem:[#allocation2 + $0x38] sm:$0xff] 0.0
          %392 = vst [vmem:[#allocation2 + $0x40] sm:$0xff] 0.0
          %393 = vst [vmem:[#allocation2 + $0x48] sm:$0xff] 0.0
          %394 = vst [vmem:[#allocation2 + $0x50] sm:$0xff] 0.0
          %395 = vst [vmem:[#allocation2 + $0x58] sm:$0xff] 0.0
          %396 = vst [vmem:[#allocation2 + $0x60] sm:$0xff] 0.0
          %397 = vst [vmem:[#allocation2 + $0x68] sm:$0xff] 0.0
          %398 = vst [vmem:[#allocation2 + $0x70] sm:$0xff] 0.0
          %399 = vst [vmem:[#allocation2 + $0x78] sm:$0xff] 0.0
          %400 = vst [vmem:[#allocation2 + $0x80] sm:$0xff] 0.0
          %401 = vst [vmem:[#allocation2 + $0x88] sm:$0xff] 0.0
          %402 = vst [vmem:[#allocation2 + $0x90] sm:$0xff] 0.0
          %403 = vst [vmem:[#allocation2 + $0x98] sm:$0xff] 0.0
          %404 = vst [vmem:[#allocation2 + $0xa0] sm:$0xff] 0.0
          %405 = vst [vmem:[#allocation2 + $0xa8] sm:$0xff] 0.0
          %406 = vst [vmem:[#allocation2 + $0xb0] sm:$0xff] 0.0
          %407 = vst [vmem:[#allocation2 + $0xb8] sm:$0xff] 0.0
          %408 = vst [vmem:[#allocation2 + $0xc0] sm:$0xff] 0.0
          %409 = vst [vmem:[#allocation2 + $0xc8] sm:$0xff] 0.0
          %410 = vst [vmem:[#allocation2 + $0xd0] sm:$0xff] 0.0
          %411 = vst [vmem:[#allocation2 + $0xd8] sm:$0xff] 0.0
          %412 = vst [vmem:[#allocation2 + $0xe0] sm:$0xff] 0.0
          %413 = vst [vmem:[#allocation2 + $0xe8] sm:$0xff] 0.0
          %414 = vst [vmem:[#allocation2 + $0xf0] sm:$0xff] 0.0
          %415 = vst [vmem:[#allocation2 + $0xf8] sm:$0xff] 0.0
          %416 = vst [vmem:[#allocation2 + $0x100] sm:$0xff] 0.0
          %417 = vst [vmem:[#allocation2 + $0x108] sm:$0xff] 0.0
          %418 = vst [vmem:[#allocation2 + $0x110] sm:$0xff] 0.0
          %419 = vst [vmem:[#allocation2 + $0x118] sm:$0xff] 0.0
          %420 = vst [vmem:[#allocation2 + $0x120] sm:$0xff] 0.0
          %421 = vst [vmem:[#allocation2 + $0x128] sm:$0xff] 0.0
          %422 = vst [vmem:[#allocation2 + $0x130] sm:$0xff] 0.0
          %423 = vst [vmem:[#allocation2 + $0x138] sm:$0xff] 0.0
          %424 = vst [vmem:[#allocation2 + $0x140] sm:$0xff] 0.0
          %425 = vst [vmem:[#allocation2 + $0x148] sm:$0xff] 0.0
          %426 = vst [vmem:[#allocation2 + $0x150] sm:$0xff] 0.0
          %427 = vst [vmem:[#allocation2 + $0x158] sm:$0xff] 0.0
          %428 = vst [vmem:[#allocation2 + $0x160] sm:$0xff] 0.0
          %429 = vst [vmem:[#allocation2 + $0x168] sm:$0xff] 0.0
          %430 = vst [vmem:[#allocation2 + $0x170] sm:$0xff] 0.0
          %431 = vst [vmem:[#allocation2 + $0x178] sm:$0xff] 0.0
          %432 = vst [vmem:[#allocation2 + $0x180] sm:$0xff] 0.0
          %433 = vst [vmem:[#allocation2 + $0x188] sm:$0xff] 0.0
          %434 = vst [vmem:[#allocation2 + $0x190] sm:$0xff] 0.0
          %435 = vst [vmem:[#allocation2 + $0x198] sm:$0xff] 0.0
          %436 = vst [vmem:[#allocation2 + $0x1a0] sm:$0xff] 0.0
          %437 = vst [vmem:[#allocation2 + $0x1a8] sm:$0xff] 0.0
          %438 = vst [vmem:[#allocation2 + $0x1b0] sm:$0xff] 0.0
          %439 = vst [vmem:[#allocation2 + $0x1b8] sm:$0xff] 0.0
          %440 = vst [vmem:[#allocation2 + $0x1c0] sm:$0xff] 0.0
          %441 = vst [vmem:[#allocation2 + $0x1c8] sm:$0xff] 0.0
          %442 = vst [vmem:[#allocation2 + $0x1d0] sm:$0xff] 0.0
          %443 = vst [vmem:[#allocation2 + $0x1d8] sm:$0xff] 0.0
          %444 = vst [vmem:[#allocation2 + $0x1e0] sm:$0xff] 0.0
          %445 = vst [vmem:[#allocation2 + $0x1e8] sm:$0xff] 0.0
          %446 = vst [vmem:[#allocation2 + $0x1f0] sm:$0xff] 0.0
          %447 = vst [vmem:[#allocation2 + $0x1f8] sm:$0xff] 0.0
        $region44: #{moe_mlp_forward.1} parent=39 // pred_fallthru
          _
        %v448 = vld [vmem:[%s326] sm:$0xff]
        %v449 = vld [vmem:[%s326 + $0x8] sm:$0xff]
        %v450 = vld [vmem:[%s326 + $0x10] sm:$0xff]
        %v451 = vld [vmem:[%s326 + $0x18] sm:$0xff]
        %v452 = vld [vmem:[%s326 + $0x20] sm:$0xff]
        %v453 = vld [vmem:[%s326 + $0x28] sm:$0xff]
        %v454 = vld [vmem:[%s326 + $0x30] sm:$0xff]
        %v455 = vld [vmem:[%s326 + $0x38] sm:$0xff]
        %v456 = vld [vmem:[%s326 + $0x40] sm:$0xff]
        %v457 = vld [vmem:[%s326 + $0x48] sm:$0xff]
        %v458 = vld [vmem:[%s326 + $0x50] sm:$0xff]
        %v459 = vld [vmem:[%s326 + $0x58] sm:$0xff]
        %v460 = vld [vmem:[%s326 + $0x60] sm:$0xff]
        %v461 = vld [vmem:[%s326 + $0x68] sm:$0xff]
        %v462 = vld [vmem:[%s326 + $0x70] sm:$0xff]
        %v463 = vld [vmem:[%s326 + $0x78] sm:$0xff]
        %v464 = vld [vmem:[%s326 + $0x80] sm:$0xff]
        %v465 = vld [vmem:[%s326 + $0x88] sm:$0xff]
        %v466 = vld [vmem:[%s326 + $0x90] sm:$0xff]
        %v467 = vld [vmem:[%s326 + $0x98] sm:$0xff]
        %v468 = vld [vmem:[%s326 + $0xa0] sm:$0xff]
        %v469 = vld [vmem:[%s326 + $0xa8] sm:$0xff]
        %v470 = vld [vmem:[%s326 + $0xb0] sm:$0xff]
        %v471 = vld [vmem:[%s326 + $0xb8] sm:$0xff]
        %v472 = vld [vmem:[%s326 + $0xc0] sm:$0xff]
        %v473 = vld [vmem:[%s326 + $0xc8] sm:$0xff]
        %v474 = vld [vmem:[%s326 + $0xd0] sm:$0xff]
        %v475 = vld [vmem:[%s326 + $0xd8] sm:$0xff]
        %v476 = vld [vmem:[%s326 + $0xe0] sm:$0xff]
        %v477 = vld [vmem:[%s326 + $0xe8] sm:$0xff]
        %v478 = vld [vmem:[%s326 + $0xf0] sm:$0xff]
        %v479 = vld [vmem:[%s326 + $0xf8] sm:$0xff]
        %v480 = vld [vmem:[%s345] sm:$0xff]
        %v481 = vld [vmem:[%s345 + $0x8] sm:$0xff]
        %v482 = vld [vmem:[%s345 + $0x10] sm:$0xff]
        %v483 = vld [vmem:[%s345 + $0x18] sm:$0xff]
        %v484 = vld [vmem:[%s345 + $0x20] sm:$0xff]
        %v485 = vld [vmem:[%s345 + $0x28] sm:$0xff]
        %v486 = vld [vmem:[%s345 + $0x30] sm:$0xff]
        %v487 = vld [vmem:[%s345 + $0x38] sm:$0xff]
        %v488 = vld [vmem:[%s345 + $0x40] sm:$0xff]
        %v489 = vld [vmem:[%s345 + $0x48] sm:$0xff]
        %v490 = vld [vmem:[%s345 + $0x50] sm:$0xff]
        %v491 = vld [vmem:[%s345 + $0x58] sm:$0xff]
        %v492 = vld [vmem:[%s345 + $0x60] sm:$0xff]
        %v493 = vld [vmem:[%s345 + $0x68] sm:$0xff]
        %v494 = vld [vmem:[%s345 + $0x70] sm:$0xff]
        %v495 = vld [vmem:[%s345 + $0x78] sm:$0xff]
        %v496 = vld [vmem:[%s345 + $0x80] sm:$0xff]
        %v497 = vld [vmem:[%s345 + $0x88] sm:$0xff]
        %v498 = vld [vmem:[%s345 + $0x90] sm:$0xff]
        %v499 = vld [vmem:[%s345 + $0x98] sm:$0xff]
        %v500 = vld [vmem:[%s345 + $0xa0] sm:$0xff]
        %v501 = vld [vmem:[%s345 + $0xa8] sm:$0xff]
        %v502 = vld [vmem:[%s345 + $0xb0] sm:$0xff]
        %v503 = vld [vmem:[%s345 + $0xb8] sm:$0xff]
        %v504 = vld [vmem:[%s345 + $0xc0] sm:$0xff]
        %v505 = vld [vmem:[%s345 + $0xc8] sm:$0xff]
        %v506 = vld [vmem:[%s345 + $0xd0] sm:$0xff]
        %v507 = vld [vmem:[%s345 + $0xd8] sm:$0xff]
        %v508 = vld [vmem:[%s345 + $0xe0] sm:$0xff]
        %v509 = vld [vmem:[%s345 + $0xe8] sm:$0xff]
        %v510 = vld [vmem:[%s345 + $0xf0] sm:$0xff]
        %v511 = vld [vmem:[%s345 + $0xf8] sm:$0xff]
        %v512 = vld [vmem:[%s362] sm:$0xff]
        %v513 = vld [vmem:[%s362 + $0x8] sm:$0xff]
        %v514 = vld [vmem:[%s362 + $0x10] sm:$0xff]
        %v515 = vld [vmem:[%s362 + $0x18] sm:$0xff]
        %v516 = vld [vmem:[%s362 + $0x20] sm:$0xff]
        %v517 = vld [vmem:[%s362 + $0x28] sm:$0xff]
        %v518 = vld [vmem:[%s362 + $0x30] sm:$0xff]
        %v519 = vld [vmem:[%s362 + $0x38] sm:$0xff]
        %v520 = vld [vmem:[%s362 + $0x40] sm:$0xff]
        %v521 = vld [vmem:[%s362 + $0x48] sm:$0xff]
        %v522 = vld [vmem:[%s362 + $0x50] sm:$0xff]
        %v523 = vld [vmem:[%s362 + $0x58] sm:$0xff]
        %v524 = vld [vmem:[%s362 + $0x60] sm:$0xff]
        %v525 = vld [vmem:[%s362 + $0x68] sm:$0xff]
        %v526 = vld [vmem:[%s362 + $0x70] sm:$0xff]
        %v527 = vld [vmem:[%s362 + $0x78] sm:$0xff]
        %v528 = vld [vmem:[%s362 + $0x80] sm:$0xff]
        %v529 = vld [vmem:[%s362 + $0x88] sm:$0xff]
        %v530 = vld [vmem:[%s362 + $0x90] sm:$0xff]
        %v531 = vld [vmem:[%s362 + $0x98] sm:$0xff]
        %v532 = vld [vmem:[%s362 + $0xa0] sm:$0xff]
        %v533 = vld [vmem:[%s362 + $0xa8] sm:$0xff]
        %v534 = vld [vmem:[%s362 + $0xb0] sm:$0xff]
        %v535 = vld [vmem:[%s362 + $0xb8] sm:$0xff]
        %v536 = vld [vmem:[%s362 + $0xc0] sm:$0xff]
        %v537 = vld [vmem:[%s362 + $0xc8] sm:$0xff]
        %v538 = vld [vmem:[%s362 + $0xd0] sm:$0xff]
        %v539 = vld [vmem:[%s362 + $0xd8] sm:$0xff]
        %v540 = vld [vmem:[%s362 + $0xe0] sm:$0xff]
        %v541 = vld [vmem:[%s362 + $0xe8] sm:$0xff]
        %v542 = vld [vmem:[%s362 + $0xf0] sm:$0xff]
        %v543 = vld [vmem:[%s362 + $0xf8] sm:$0xff]
        %v576 = vunpack.c.l.b16 %v448
        %v577 = vunpack.c.h.b16 %v448
        %v578 = vunpack.c.l.b16 %v449
        %v579 = vunpack.c.h.b16 %v449
        %v580 = vunpack.c.l.b16 %v450
        %v581 = vunpack.c.h.b16 %v450
        %v582 = vunpack.c.l.b16 %v451
        %v583 = vunpack.c.h.b16 %v451
        %v584 = vunpack.c.l.b16 %v452
        %v585 = vunpack.c.h.b16 %v452
        %v586 = vunpack.c.l.b16 %v453
        %v587 = vunpack.c.h.b16 %v453
        %v588 = vunpack.c.l.b16 %v454
        %v589 = vunpack.c.h.b16 %v454
        %v590 = vunpack.c.l.b16 %v455
        %v591 = vunpack.c.h.b16 %v455
        %v592 = vunpack.c.l.b16 %v456
        %v593 = vunpack.c.h.b16 %v456
        %v594 = vunpack.c.l.b16 %v457
        %v595 = vunpack.c.h.b16 %v457
        %v596 = vunpack.c.l.b16 %v458
        %v597 = vunpack.c.h.b16 %v458
        %v598 = vunpack.c.l.b16 %v459
        %v599 = vunpack.c.h.b16 %v459
        %v600 = vunpack.c.l.b16 %v460
        %v601 = vunpack.c.h.b16 %v460
        %v602 = vunpack.c.l.b16 %v461
        %v603 = vunpack.c.h.b16 %v461
        %v604 = vunpack.c.l.b16 %v462
        %v605 = vunpack.c.h.b16 %v462
        %v606 = vunpack.c.l.b16 %v463
        %v607 = vunpack.c.h.b16 %v463
        %v608 = vunpack.c.l.b16 %v464
        %v609 = vunpack.c.h.b16 %v464
        %v610 = vunpack.c.l.b16 %v465
        %v611 = vunpack.c.h.b16 %v465
        %v612 = vunpack.c.l.b16 %v466
        %v613 = vunpack.c.h.b16 %v466
        %v614 = vunpack.c.l.b16 %v467
        %v615 = vunpack.c.h.b16 %v467
        %v616 = vunpack.c.l.b16 %v468
        %v617 = vunpack.c.h.b16 %v468
        %v618 = vunpack.c.l.b16 %v469
        %v619 = vunpack.c.h.b16 %v469
        %v620 = vunpack.c.l.b16 %v470
        %v621 = vunpack.c.h.b16 %v470
        %v622 = vunpack.c.l.b16 %v471
        %v623 = vunpack.c.h.b16 %v471
        %v624 = vunpack.c.l.b16 %v472
        %v625 = vunpack.c.h.b16 %v472
        %v626 = vunpack.c.l.b16 %v473
        %v627 = vunpack.c.h.b16 %v473
        %v628 = vunpack.c.l.b16 %v474
        %v629 = vunpack.c.h.b16 %v474
        %v630 = vunpack.c.l.b16 %v475
        %v631 = vunpack.c.h.b16 %v475
        %v632 = vunpack.c.l.b16 %v476
        %v633 = vunpack.c.h.b16 %v476
        %v634 = vunpack.c.l.b16 %v477
        %v635 = vunpack.c.h.b16 %v477
        %v636 = vunpack.c.l.b16 %v478
        %v637 = vunpack.c.h.b16 %v478
        %v638 = vunpack.c.l.b16 %v479
        %v639 = vunpack.c.h.b16 %v479
        %v640 = vpack.c.b16 %v578, %v576
        %v641 = vpack.c.b16 %v579, %v577
        %v642 = vpack.c.b16 %v582, %v580
        %v643 = vpack.c.b16 %v583, %v581
        %v644 = vpack.c.b16 %v586, %v584
        %v645 = vpack.c.b16 %v587, %v585
        %v646 = vpack.c.b16 %v590, %v588
        %v647 = vpack.c.b16 %v591, %v589
        %v648 = vpack.c.b16 %v594, %v592
        %v649 = vpack.c.b16 %v595, %v593
        %v650 = vpack.c.b16 %v598, %v596
        %v651 = vpack.c.b16 %v599, %v597
        %v652 = vpack.c.b16 %v602, %v600
        %v653 = vpack.c.b16 %v603, %v601
        %v654 = vpack.c.b16 %v606, %v604
        %v655 = vpack.c.b16 %v607, %v605
        %v656 = vpack.c.b16 %v610, %v608
        %v657 = vpack.c.b16 %v611, %v609
        %v658 = vpack.c.b16 %v614, %v612
        %v659 = vpack.c.b16 %v615, %v613
        %v660 = vpack.c.b16 %v618, %v616
        %v661 = vpack.c.b16 %v619, %v617
        %v662 = vpack.c.b16 %v622, %v620
        %v663 = vpack.c.b16 %v623, %v621
        %v664 = vpack.c.b16 %v626, %v624
        %v665 = vpack.c.b16 %v627, %v625
        %v666 = vpack.c.b16 %v630, %v628
        %v667 = vpack.c.b16 %v631, %v629
        %v668 = vpack.c.b16 %v634, %v632
        %v669 = vpack.c.b16 %v635, %v633
        %v670 = vpack.c.b16 %v638, %v636
        %v671 = vpack.c.b16 %v639, %v637
        %v736 = vunpack.c.l.b16 %v480
        %v737 = vunpack.c.h.b16 %v480
        %v738 = vunpack.c.l.b16 %v481
        %v739 = vunpack.c.h.b16 %v481
        %v740 = vunpack.c.l.b16 %v482
        %v741 = vunpack.c.h.b16 %v482
        %v742 = vunpack.c.l.b16 %v483
        %v743 = vunpack.c.h.b16 %v483
        %v744 = vunpack.c.l.b16 %v484
        %v745 = vunpack.c.h.b16 %v484
        %v746 = vunpack.c.l.b16 %v485
        %v747 = vunpack.c.h.b16 %v485
        %v748 = vunpack.c.l.b16 %v486
        %v749 = vunpack.c.h.b16 %v486
        %v750 = vunpack.c.l.b16 %v487
        %v751 = vunpack.c.h.b16 %v487
        %v752 = vunpack.c.l.b16 %v488
        %v753 = vunpack.c.h.b16 %v488
        %v754 = vunpack.c.l.b16 %v489
        %v755 = vunpack.c.h.b16 %v489
        %v756 = vunpack.c.l.b16 %v490
        %v757 = vunpack.c.h.b16 %v490
        %v758 = vunpack.c.l.b16 %v491
        %v759 = vunpack.c.h.b16 %v491
        %v760 = vunpack.c.l.b16 %v492
        %v761 = vunpack.c.h.b16 %v492
        %v762 = vunpack.c.l.b16 %v493
        %v763 = vunpack.c.h.b16 %v493
        %v764 = vunpack.c.l.b16 %v494
        %v765 = vunpack.c.h.b16 %v494
        %v766 = vunpack.c.l.b16 %v495
        %v767 = vunpack.c.h.b16 %v495
        %v768 = vunpack.c.l.b16 %v496
        %v769 = vunpack.c.h.b16 %v496
        %v770 = vunpack.c.l.b16 %v497
        %v771 = vunpack.c.h.b16 %v497
        %v772 = vunpack.c.l.b16 %v498
        %v773 = vunpack.c.h.b16 %v498
        %v774 = vunpack.c.l.b16 %v499
        %v775 = vunpack.c.h.b16 %v499
        %v776 = vunpack.c.l.b16 %v500
        %v777 = vunpack.c.h.b16 %v500
        %v778 = vunpack.c.l.b16 %v501
        %v779 = vunpack.c.h.b16 %v501
        %v780 = vunpack.c.l.b16 %v502
        %v781 = vunpack.c.h.b16 %v502
        %v782 = vunpack.c.l.b16 %v503
        %v783 = vunpack.c.h.b16 %v503
        %v784 = vunpack.c.l.b16 %v504
        %v785 = vunpack.c.h.b16 %v504
        %v786 = vunpack.c.l.b16 %v505
        %v787 = vunpack.c.h.b16 %v505
        %v788 = vunpack.c.l.b16 %v506
        %v789 = vunpack.c.h.b16 %v506
        %v790 = vunpack.c.l.b16 %v507
        %v791 = vunpack.c.h.b16 %v507
        %v792 = vunpack.c.l.b16 %v508
        %v793 = vunpack.c.h.b16 %v508
        %v794 = vunpack.c.l.b16 %v509
        %v795 = vunpack.c.h.b16 %v509
        %v796 = vunpack.c.l.b16 %v510
        %v797 = vunpack.c.h.b16 %v510
        %v798 = vunpack.c.l.b16 %v511
        %v799 = vunpack.c.h.b16 %v511
        %v800 = vpack.c.b16 %v738, %v736
        %v801 = vpack.c.b16 %v739, %v737
        %v802 = vpack.c.b16 %v742, %v740
        %v803 = vpack.c.b16 %v743, %v741
        %v804 = vpack.c.b16 %v746, %v744
        %v805 = vpack.c.b16 %v747, %v745
        %v806 = vpack.c.b16 %v750, %v748
        %v807 = vpack.c.b16 %v751, %v749
        %v808 = vpack.c.b16 %v754, %v752
        %v809 = vpack.c.b16 %v755, %v753
        %v810 = vpack.c.b16 %v758, %v756
        %v811 = vpack.c.b16 %v759, %v757
        %v812 = vpack.c.b16 %v762, %v760
        %v813 = vpack.c.b16 %v763, %v761
        %v814 = vpack.c.b16 %v766, %v764
        %v815 = vpack.c.b16 %v767, %v765
        %v816 = vpack.c.b16 %v770, %v768
        %v817 = vpack.c.b16 %v771, %v769
        %v818 = vpack.c.b16 %v774, %v772
        %v819 = vpack.c.b16 %v775, %v773
        %v820 = vpack.c.b16 %v778, %v776
        %v821 = vpack.c.b16 %v779, %v777
        %v822 = vpack.c.b16 %v782, %v780
        %v823 = vpack.c.b16 %v783, %v781
        %v824 = vpack.c.b16 %v786, %v784
        %v825 = vpack.c.b16 %v787, %v785
        %v826 = vpack.c.b16 %v790, %v788
        %v827 = vpack.c.b16 %v791, %v789
        %v828 = vpack.c.b16 %v794, %v792
        %v829 = vpack.c.b16 %v795, %v793
        %v830 = vpack.c.b16 %v798, %v796
        %v831 = vpack.c.b16 %v799, %v797
        %864 = vmatpush.bf16.msra.mxu0 %v814
        %865 = vmatpush.bf16.msra.mxu0 %v812
        %866 = vmatpush.bf16.msra.mxu0 %v810
        %867 = vmatpush.bf16.msra.mxu0 %v808
        %868 = vmatpush.bf16.msra.mxu0 %v806
        %869 = vmatpush.bf16.msra.mxu0 %v804
        %870 = vmatpush.bf16.msra.mxu0 %v802
        %871 = vmatpush.bf16.msra.mxu0 %v800
        %872 = vmatmul.bf16.gmra.mxu0 %v640
        %v873 = vpop.f32.mrf.mxu0
        %v874 = vadd.f32 0.0, %v873
        %v875 = vpop.f32.mrf.mxu0
        %v876 = vadd.f32 0.0, %v875
        %877 = vmatmul.bf16.gmra.mxu0 %v642
        %v878 = vpop.f32.mrf.mxu0
        %v879 = vadd.f32 0.0, %v878
        %v880 = vpop.f32.mrf.mxu0
        %v881 = vadd.f32 0.0, %v880
        %882 = vmatmul.bf16.gmra.mxu0 %v644
        %v883 = vpop.f32.mrf.mxu0
        %v884 = vadd.f32 0.0, %v883
        %v885 = vpop.f32.mrf.mxu0
        %v886 = vadd.f32 0.0, %v885
        %887 = vmatmul.bf16.gmra.mxu0 %v646
        %v888 = vpop.f32.mrf.mxu0
        %v889 = vadd.f32 0.0, %v888
        %v890 = vpop.f32.mrf.mxu0
        %v891 = vadd.f32 0.0, %v890
        %892 = vmatmul.bf16.gmra.mxu0 %v648
        %v893 = vpop.f32.mrf.mxu0
        %v894 = vadd.f32 0.0, %v893
        %v895 = vpop.f32.mrf.mxu0
        %v896 = vadd.f32 0.0, %v895
        %897 = vmatmul.bf16.gmra.mxu0 %v650
        %v898 = vpop.f32.mrf.mxu0
        %v899 = vadd.f32 0.0, %v898
        %v900 = vpop.f32.mrf.mxu0
        %v901 = vadd.f32 0.0, %v900
        %902 = vmatmul.bf16.gmra.mxu0 %v652
        %v903 = vpop.f32.mrf.mxu0
        %v904 = vadd.f32 0.0, %v903
        %v905 = vpop.f32.mrf.mxu0
        %v906 = vadd.f32 0.0, %v905
        %907 = vmatmul.bf16.gmra.mxu0 %v654
        %v908 = vpop.f32.mrf.mxu0
        %v909 = vadd.f32 0.0, %v908
        %v910 = vpop.f32.mrf.mxu0
        %v911 = vadd.f32 0.0, %v910
        %912 = vmatmul.bf16.gmra.mxu0 %v656
        %v913 = vpop.f32.mrf.mxu0
        %v914 = vadd.f32 0.0, %v913
        %v915 = vpop.f32.mrf.mxu0
        %v916 = vadd.f32 0.0, %v915
        %917 = vmatmul.bf16.gmra.mxu0 %v658
        %v918 = vpop.f32.mrf.mxu0
        %v919 = vadd.f32 0.0, %v918
        %v920 = vpop.f32.mrf.mxu0
        %v921 = vadd.f32 0.0, %v920
        %922 = vmatmul.bf16.gmra.mxu0 %v660
        %v923 = vpop.f32.mrf.mxu0
        %v924 = vadd.f32 0.0, %v923
        %v925 = vpop.f32.mrf.mxu0
        %v926 = vadd.f32 0.0, %v925
        %927 = vmatmul.bf16.gmra.mxu0 %v662
        %v928 = vpop.f32.mrf.mxu0
        %v929 = vadd.f32 0.0, %v928
        %v930 = vpop.f32.mrf.mxu0
        %v931 = vadd.f32 0.0, %v930
        %932 = vmatmul.bf16.gmra.mxu0 %v664
        %v933 = vpop.f32.mrf.mxu0
        %v934 = vadd.f32 0.0, %v933
        %v935 = vpop.f32.mrf.mxu0
        %v936 = vadd.f32 0.0, %v935
        %937 = vmatmul.bf16.gmra.mxu0 %v666
        %v938 = vpop.f32.mrf.mxu0
        %v939 = vadd.f32 0.0, %v938
        %v940 = vpop.f32.mrf.mxu0
        %v941 = vadd.f32 0.0, %v940
        %942 = vmatmul.bf16.gmra.mxu0 %v668
        %v943 = vpop.f32.mrf.mxu0
        %v944 = vadd.f32 0.0, %v943
        %v945 = vpop.f32.mrf.mxu0
        %v946 = vadd.f32 0.0, %v945
        %947 = vmatmul.bf16.gmra.mxu0 %v670
        %v948 = vpop.f32.mrf.mxu0
        %v949 = vadd.f32 0.0, %v948
        %v950 = vpop.f32.mrf.mxu0
        %v951 = vadd.f32 0.0, %v950
        %952 = vdwg.mxu0
        %953 = vmatpush.bf16.msra.mxu0 %v830
        %954 = vmatpush.bf16.msra.mxu0 %v828
        %955 = vmatpush.bf16.msra.mxu0 %v826
        %956 = vmatpush.bf16.msra.mxu0 %v824
        %957 = vmatpush.bf16.msra.mxu0 %v822
        %958 = vmatpush.bf16.msra.mxu0 %v820
        %959 = vmatpush.bf16.msra.mxu0 %v818
        %960 = vmatpush.bf16.msra.mxu0 %v816
        %961 = vmatmul.bf16.gmra.mxu0 %v641
        %v962 = vpop.f32.mrf.mxu0
        %v963 = vadd.f32 %v874, %v962
        %v964 = vpop.f32.mrf.mxu0
        %v965 = vadd.f32 %v876, %v964
        %966 = vmatmul.bf16.gmra.mxu0 %v643
        %v967 = vpop.f32.mrf.mxu0
        %v968 = vadd.f32 %v879, %v967
        %v969 = vpop.f32.mrf.mxu0
        %v970 = vadd.f32 %v881, %v969
        %971 = vmatmul.bf16.gmra.mxu0 %v645
        %v972 = vpop.f32.mrf.mxu0
        %v973 = vadd.f32 %v884, %v972
        %v974 = vpop.f32.mrf.mxu0
        %v975 = vadd.f32 %v886, %v974
        %976 = vmatmul.bf16.gmra.mxu0 %v647
        %v977 = vpop.f32.mrf.mxu0
        %v978 = vadd.f32 %v889, %v977
        %v979 = vpop.f32.mrf.mxu0
        %v980 = vadd.f32 %v891, %v979
        %981 = vmatmul.bf16.gmra.mxu0 %v649
        %v982 = vpop.f32.mrf.mxu0
        %v983 = vadd.f32 %v894, %v982
        %v984 = vpop.f32.mrf.mxu0
        %v985 = vadd.f32 %v896, %v984
        %986 = vmatmul.bf16.gmra.mxu0 %v651
        %v987 = vpop.f32.mrf.mxu0
        %v988 = vadd.f32 %v899, %v987
        %v989 = vpop.f32.mrf.mxu0
        %v990 = vadd.f32 %v901, %v989
        %991 = vmatmul.bf16.gmra.mxu0 %v653
        %v992 = vpop.f32.mrf.mxu0
        %v993 = vadd.f32 %v904, %v992
        %v994 = vpop.f32.mrf.mxu0
        %v995 = vadd.f32 %v906, %v994
        %996 = vmatmul.bf16.gmra.mxu0 %v655
        %v997 = vpop.f32.mrf.mxu0
        %v998 = vadd.f32 %v909, %v997
        %v999 = vpop.f32.mrf.mxu0
        %v1000 = vadd.f32 %v911, %v999
        %1001 = vmatmul.bf16.gmra.mxu0 %v657
        %v1002 = vpop.f32.mrf.mxu0
        %v1003 = vadd.f32 %v914, %v1002
        %v1004 = vpop.f32.mrf.mxu0
        %v1005 = vadd.f32 %v916, %v1004
        %1006 = vmatmul.bf16.gmra.mxu0 %v659
        %v1007 = vpop.f32.mrf.mxu0
        %v1008 = vadd.f32 %v919, %v1007
        %v1009 = vpop.f32.mrf.mxu0
        %v1010 = vadd.f32 %v921, %v1009
        %1011 = vmatmul.bf16.gmra.mxu0 %v661
        %v1012 = vpop.f32.mrf.mxu0
        %v1013 = vadd.f32 %v924, %v1012
        %v1014 = vpop.f32.mrf.mxu0
        %v1015 = vadd.f32 %v926, %v1014
        %1016 = vmatmul.bf16.gmra.mxu0 %v663
        %v1017 = vpop.f32.mrf.mxu0
        %v1018 = vadd.f32 %v929, %v1017
        %v1019 = vpop.f32.mrf.mxu0
        %v1020 = vadd.f32 %v931, %v1019
        %1021 = vmatmul.bf16.gmra.mxu0 %v665
        %v1022 = vpop.f32.mrf.mxu0
        %v1023 = vadd.f32 %v934, %v1022
        %v1024 = vpop.f32.mrf.mxu0
        %v1025 = vadd.f32 %v936, %v1024
        %1026 = vmatmul.bf16.gmra.mxu0 %v667
        %v1027 = vpop.f32.mrf.mxu0
        %v1028 = vadd.f32 %v939, %v1027
        %v1029 = vpop.f32.mrf.mxu0
        %v1030 = vadd.f32 %v941, %v1029
        %1031 = vmatmul.bf16.gmra.mxu0 %v669
        %v1032 = vpop.f32.mrf.mxu0
        %v1033 = vadd.f32 %v944, %v1032
        %v1034 = vpop.f32.mrf.mxu0
        %v1035 = vadd.f32 %v946, %v1034
        %1036 = vmatmul.bf16.gmra.mxu0 %v671
        %v1037 = vpop.f32.mrf.mxu0
        %v1038 = vadd.f32 %v949, %v1037
        %v1039 = vpop.f32.mrf.mxu0
        %v1040 = vadd.f32 %v951, %v1039
        %1041 = vdwg.mxu0
        %1042 = vmatpush.bf16.msra.mxu0 %v815
        %1043 = vmatpush.bf16.msra.mxu0 %v813
        %1044 = vmatpush.bf16.msra.mxu0 %v811
        %1045 = vmatpush.bf16.msra.mxu0 %v809
        %1046 = vmatpush.bf16.msra.mxu0 %v807
        %1047 = vmatpush.bf16.msra.mxu0 %v805
        %1048 = vmatpush.bf16.msra.mxu0 %v803
        %1049 = vmatpush.bf16.msra.mxu0 %v801
        %1050 = vmatmul.bf16.gmra.mxu0 %v640
        %v1051 = vpop.f32.mrf.mxu0
        %v1052 = vadd.f32 0.0, %v1051
        %v1053 = vpop.f32.mrf.mxu0
        %v1054 = vadd.f32 0.0, %v1053
        %1055 = vmatmul.bf16.gmra.mxu0 %v642
        %v1056 = vpop.f32.mrf.mxu0
        %v1057 = vadd.f32 0.0, %v1056
        %v1058 = vpop.f32.mrf.mxu0
        %v1059 = vadd.f32 0.0, %v1058
        %1060 = vmatmul.bf16.gmra.mxu0 %v644
        %v1061 = vpop.f32.mrf.mxu0
        %v1062 = vadd.f32 0.0, %v1061
        %v1063 = vpop.f32.mrf.mxu0
        %v1064 = vadd.f32 0.0, %v1063
        %1065 = vmatmul.bf16.gmra.mxu0 %v646
        %v1066 = vpop.f32.mrf.mxu0
        %v1067 = vadd.f32 0.0, %v1066
        %v1068 = vpop.f32.mrf.mxu0
        %v1069 = vadd.f32 0.0, %v1068
        %1070 = vmatmul.bf16.gmra.mxu0 %v648
        %v1071 = vpop.f32.mrf.mxu0
        %v1072 = vadd.f32 0.0, %v1071
        %v1073 = vpop.f32.mrf.mxu0
        %v1074 = vadd.f32 0.0, %v1073
        %1075 = vmatmul.bf16.gmra.mxu0 %v650
        %v1076 = vpop.f32.mrf.mxu0
        %v1077 = vadd.f32 0.0, %v1076
        %v1078 = vpop.f32.mrf.mxu0
        %v1079 = vadd.f32 0.0, %v1078
        %1080 = vmatmul.bf16.gmra.mxu0 %v652
        %v1081 = vpop.f32.mrf.mxu0
        %v1082 = vadd.f32 0.0, %v1081
        %v1083 = vpop.f32.mrf.mxu0
        %v1084 = vadd.f32 0.0, %v1083
        %1085 = vmatmul.bf16.gmra.mxu0 %v654
        %v1086 = vpop.f32.mrf.mxu0
        %v1087 = vadd.f32 0.0, %v1086
        %v1088 = vpop.f32.mrf.mxu0
        %v1089 = vadd.f32 0.0, %v1088
        %1090 = vmatmul.bf16.gmra.mxu0 %v656
        %v1091 = vpop.f32.mrf.mxu0
        %v1092 = vadd.f32 0.0, %v1091
        %v1093 = vpop.f32.mrf.mxu0
        %v1094 = vadd.f32 0.0, %v1093
        %1095 = vmatmul.bf16.gmra.mxu0 %v658
        %v1096 = vpop.f32.mrf.mxu0
        %v1097 = vadd.f32 0.0, %v1096
        %v1098 = vpop.f32.mrf.mxu0
        %v1099 = vadd.f32 0.0, %v1098
        %1100 = vmatmul.bf16.gmra.mxu0 %v660
        %v1101 = vpop.f32.mrf.mxu0
        %v1102 = vadd.f32 0.0, %v1101
        %v1103 = vpop.f32.mrf.mxu0
        %v1104 = vadd.f32 0.0, %v1103
        %1105 = vmatmul.bf16.gmra.mxu0 %v662
        %v1106 = vpop.f32.mrf.mxu0
        %v1107 = vadd.f32 0.0, %v1106
        %v1108 = vpop.f32.mrf.mxu0
        %v1109 = vadd.f32 0.0, %v1108
        %1110 = vmatmul.bf16.gmra.mxu0 %v664
        %v1111 = vpop.f32.mrf.mxu0
        %v1112 = vadd.f32 0.0, %v1111
        %v1113 = vpop.f32.mrf.mxu0
        %v1114 = vadd.f32 0.0, %v1113
        %1115 = vmatmul.bf16.gmra.mxu0 %v666
        %v1116 = vpop.f32.mrf.mxu0
        %v1117 = vadd.f32 0.0, %v1116
        %v1118 = vpop.f32.mrf.mxu0
        %v1119 = vadd.f32 0.0, %v1118
        %1120 = vmatmul.bf16.gmra.mxu0 %v668
        %v1121 = vpop.f32.mrf.mxu0
        %v1122 = vadd.f32 0.0, %v1121
        %v1123 = vpop.f32.mrf.mxu0
        %v1124 = vadd.f32 0.0, %v1123
        %1125 = vmatmul.bf16.gmra.mxu0 %v670
        %v1126 = vpop.f32.mrf.mxu0
        %v1127 = vadd.f32 0.0, %v1126
        %v1128 = vpop.f32.mrf.mxu0
        %v1129 = vadd.f32 0.0, %v1128
        %1130 = vdwg.mxu0
        %1131 = vmatpush.bf16.msra.mxu0 %v831
        %1132 = vmatpush.bf16.msra.mxu0 %v829
        %1133 = vmatpush.bf16.msra.mxu0 %v827
        %1134 = vmatpush.bf16.msra.mxu0 %v825
        %1135 = vmatpush.bf16.msra.mxu0 %v823
        %1136 = vmatpush.bf16.msra.mxu0 %v821
        %1137 = vmatpush.bf16.msra.mxu0 %v819
        %1138 = vmatpush.bf16.msra.mxu0 %v817
        %1139 = vmatmul.bf16.gmra.mxu0 %v641
        %v1140 = vpop.f32.mrf.mxu0
        %v1141 = vadd.f32 %v1052, %v1140
        %v1142 = vpop.f32.mrf.mxu0
        %v1143 = vadd.f32 %v1054, %v1142
        %1144 = vmatmul.bf16.gmra.mxu0 %v643
        %v1145 = vpop.f32.mrf.mxu0
        %v1146 = vadd.f32 %v1057, %v1145
        %v1147 = vpop.f32.mrf.mxu0
        %v1148 = vadd.f32 %v1059, %v1147
        %1149 = vmatmul.bf16.gmra.mxu0 %v645
        %v1150 = vpop.f32.mrf.mxu0
        %v1151 = vadd.f32 %v1062, %v1150
        %v1152 = vpop.f32.mrf.mxu0
        %v1153 = vadd.f32 %v1064, %v1152
        %1154 = vmatmul.bf16.gmra.mxu0 %v647
        %v1155 = vpop.f32.mrf.mxu0
        %v1156 = vadd.f32 %v1067, %v1155
        %v1157 = vpop.f32.mrf.mxu0
        %v1158 = vadd.f32 %v1069, %v1157
        %1159 = vmatmul.bf16.gmra.mxu0 %v649
        %v1160 = vpop.f32.mrf.mxu0
        %v1161 = vadd.f32 %v1072, %v1160
        %v1162 = vpop.f32.mrf.mxu0
        %v1163 = vadd.f32 %v1074, %v1162
        %1164 = vmatmul.bf16.gmra.mxu0 %v651
        %v1165 = vpop.f32.mrf.mxu0
        %v1166 = vadd.f32 %v1077, %v1165
        %v1167 = vpop.f32.mrf.mxu0
        %v1168 = vadd.f32 %v1079, %v1167
        %1169 = vmatmul.bf16.gmra.mxu0 %v653
        %v1170 = vpop.f32.mrf.mxu0
        %v1171 = vadd.f32 %v1082, %v1170
        %v1172 = vpop.f32.mrf.mxu0
        %v1173 = vadd.f32 %v1084, %v1172
        %1174 = vmatmul.bf16.gmra.mxu0 %v655
        %v1175 = vpop.f32.mrf.mxu0
        %v1176 = vadd.f32 %v1087, %v1175
        %v1177 = vpop.f32.mrf.mxu0
        %v1178 = vadd.f32 %v1089, %v1177
        %1179 = vmatmul.bf16.gmra.mxu0 %v657
        %v1180 = vpop.f32.mrf.mxu0
        %v1181 = vadd.f32 %v1092, %v1180
        %v1182 = vpop.f32.mrf.mxu0
        %v1183 = vadd.f32 %v1094, %v1182
        %1184 = vmatmul.bf16.gmra.mxu0 %v659
        %v1185 = vpop.f32.mrf.mxu0
        %v1186 = vadd.f32 %v1097, %v1185
        %v1187 = vpop.f32.mrf.mxu0
        %v1188 = vadd.f32 %v1099, %v1187
        %1189 = vmatmul.bf16.gmra.mxu0 %v661
        %v1190 = vpop.f32.mrf.mxu0
        %v1191 = vadd.f32 %v1102, %v1190
        %v1192 = vpop.f32.mrf.mxu0
        %v1193 = vadd.f32 %v1104, %v1192
        %1194 = vmatmul.bf16.gmra.mxu0 %v663
        %v1195 = vpop.f32.mrf.mxu0
        %v1196 = vadd.f32 %v1107, %v1195
        %v1197 = vpop.f32.mrf.mxu0
        %v1198 = vadd.f32 %v1109, %v1197
        %1199 = vmatmul.bf16.gmra.mxu0 %v665
        %v1200 = vpop.f32.mrf.mxu0
        %v1201 = vadd.f32 %v1112, %v1200
        %v1202 = vpop.f32.mrf.mxu0
        %v1203 = vadd.f32 %v1114, %v1202
        %1204 = vmatmul.bf16.gmra.mxu0 %v667
        %v1205 = vpop.f32.mrf.mxu0
        %v1206 = vadd.f32 %v1117, %v1205
        %v1207 = vpop.f32.mrf.mxu0
        %v1208 = vadd.f32 %v1119, %v1207
        %1209 = vmatmul.bf16.gmra.mxu0 %v669
        %v1210 = vpop.f32.mrf.mxu0
        %v1211 = vadd.f32 %v1122, %v1210
        %v1212 = vpop.f32.mrf.mxu0
        %v1213 = vadd.f32 %v1124, %v1212
        %1214 = vmatmul.bf16.gmra.mxu0 %v671
        %v1215 = vpop.f32.mrf.mxu0
        %v1216 = vadd.f32 %v1127, %v1215
        %v1217 = vpop.f32.mrf.mxu0
        %v1218 = vadd.f32 %v1129, %v1217
        %1219 = vdwg.mxu0
        %v1220 = vmul.f32 %v963, %v963
        %v1221 = vmul.f32 %v1141, %v1141
        %v1222 = vmul.f32 %v965, %v965
        %v1223 = vmul.f32 %v1143, %v1143
        %v1224 = vmul.f32 %v968, %v968
        %v1225 = vmul.f32 %v1146, %v1146
        %v1226 = vmul.f32 %v970, %v970
        %v1227 = vmul.f32 %v1148, %v1148
        %v1228 = vmul.f32 %v973, %v973
        %v1229 = vmul.f32 %v1151, %v1151
        %v1230 = vmul.f32 %v975, %v975
        %v1231 = vmul.f32 %v1153, %v1153
        %v1232 = vmul.f32 %v978, %v978
        %v1233 = vmul.f32 %v1156, %v1156
        %v1234 = vmul.f32 %v980, %v980
        %v1235 = vmul.f32 %v1158, %v1158
        %v1236 = vmul.f32 %v983, %v983
        %v1237 = vmul.f32 %v1161, %v1161
        %v1238 = vmul.f32 %v985, %v985
        %v1239 = vmul.f32 %v1163, %v1163
        %v1240 = vmul.f32 %v988, %v988
        %v1241 = vmul.f32 %v1166, %v1166
        %v1242 = vmul.f32 %v990, %v990
        %v1243 = vmul.f32 %v1168, %v1168
        %v1244 = vmul.f32 %v993, %v993
        %v1245 = vmul.f32 %v1171, %v1171
        %v1246 = vmul.f32 %v995, %v995
        %v1247 = vmul.f32 %v1173, %v1173
        %v1248 = vmul.f32 %v998, %v998
        %v1249 = vmul.f32 %v1176, %v1176
        %v1250 = vmul.f32 %v1000, %v1000
        %v1251 = vmul.f32 %v1178, %v1178
        %v1252 = vmul.f32 %v1003, %v1003
        %v1253 = vmul.f32 %v1181, %v1181
        %v1254 = vmul.f32 %v1005, %v1005
        %v1255 = vmul.f32 %v1183, %v1183
        %v1256 = vmul.f32 %v1008, %v1008
        %v1257 = vmul.f32 %v1186, %v1186
        %v1258 = vmul.f32 %v1010, %v1010
        %v1259 = vmul.f32 %v1188, %v1188
        %v1260 = vmul.f32 %v1013, %v1013
        %v1261 = vmul.f32 %v1191, %v1191
        %v1262 = vmul.f32 %v1015, %v1015
        %v1263 = vmul.f32 %v1193, %v1193
        %v1264 = vmul.f32 %v1018, %v1018
        %v1265 = vmul.f32 %v1196, %v1196
        %v1266 = vmul.f32 %v1020, %v1020
        %v1267 = vmul.f32 %v1198, %v1198
        %v1268 = vmul.f32 %v1023, %v1023
        %v1269 = vmul.f32 %v1201, %v1201
        %v1270 = vmul.f32 %v1025, %v1025
        %v1271 = vmul.f32 %v1203, %v1203
        %v1272 = vmul.f32 %v1028, %v1028
        %v1273 = vmul.f32 %v1206, %v1206
        %v1274 = vmul.f32 %v1030, %v1030
        %v1275 = vmul.f32 %v1208, %v1208
        %v1276 = vmul.f32 %v1033, %v1033
        %v1277 = vmul.f32 %v1211, %v1211
        %v1278 = vmul.f32 %v1035, %v1035
        %v1279 = vmul.f32 %v1213, %v1213
        %v1280 = vmul.f32 %v1038, %v1038
        %v1281 = vmul.f32 %v1216, %v1216
        %v1282 = vmul.f32 %v1040, %v1040
        %v1283 = vmul.f32 %v1218, %v1218
        %v1284 = vmul.f32 %v963, %v1220
        %v1285 = vmul.f32 %v1141, %v1221
        %v1286 = vmul.f32 %v965, %v1222
        %v1287 = vmul.f32 %v1143, %v1223
        %v1288 = vmul.f32 %v968, %v1224
        %v1289 = vmul.f32 %v1146, %v1225
        %v1290 = vmul.f32 %v970, %v1226
        %v1291 = vmul.f32 %v1148, %v1227
        %v1292 = vmul.f32 %v973, %v1228
        %v1293 = vmul.f32 %v1151, %v1229
        %v1294 = vmul.f32 %v975, %v1230
        %v1295 = vmul.f32 %v1153, %v1231
        %v1296 = vmul.f32 %v978, %v1232
        %v1297 = vmul.f32 %v1156, %v1233
        %v1298 = vmul.f32 %v980, %v1234
        %v1299 = vmul.f32 %v1158, %v1235
        %v1300 = vmul.f32 %v983, %v1236
        %v1301 = vmul.f32 %v1161, %v1237
        %v1302 = vmul.f32 %v985, %v1238
        %v1303 = vmul.f32 %v1163, %v1239
        %v1304 = vmul.f32 %v988, %v1240
        %v1305 = vmul.f32 %v1166, %v1241
        %v1306 = vmul.f32 %v990, %v1242
        %v1307 = vmul.f32 %v1168, %v1243
        %v1308 = vmul.f32 %v993, %v1244
        %v1309 = vmul.f32 %v1171, %v1245
        %v1310 = vmul.f32 %v995, %v1246
        %v1311 = vmul.f32 %v1173, %v1247
        %v1312 = vmul.f32 %v998, %v1248
        %v1313 = vmul.f32 %v1176, %v1249
        %v1314 = vmul.f32 %v1000, %v1250
        %v1315 = vmul.f32 %v1178, %v1251
        %v1316 = vmul.f32 %v1003, %v1252
        %v1317 = vmul.f32 %v1181, %v1253
        %v1318 = vmul.f32 %v1005, %v1254
        %v1319 = vmul.f32 %v1183, %v1255
        %v1320 = vmul.f32 %v1008, %v1256
        %v1321 = vmul.f32 %v1186, %v1257
        %v1322 = vmul.f32 %v1010, %v1258
        %v1323 = vmul.f32 %v1188, %v1259
        %v1324 = vmul.f32 %v1013, %v1260
        %v1325 = vmul.f32 %v1191, %v1261
        %v1326 = vmul.f32 %v1015, %v1262
        %v1327 = vmul.f32 %v1193, %v1263
        %v1328 = vmul.f32 %v1018, %v1264
        %v1329 = vmul.f32 %v1196, %v1265
        %v1330 = vmul.f32 %v1020, %v1266
        %v1331 = vmul.f32 %v1198, %v1267
        %v1332 = vmul.f32 %v1023, %v1268
        %v1333 = vmul.f32 %v1201, %v1269
        %v1334 = vmul.f32 %v1025, %v1270
        %v1335 = vmul.f32 %v1203, %v1271
        %v1336 = vmul.f32 %v1028, %v1272
        %v1337 = vmul.f32 %v1206, %v1273
        %v1338 = vmul.f32 %v1030, %v1274
        %v1339 = vmul.f32 %v1208, %v1275
        %v1340 = vmul.f32 %v1033, %v1276
        %v1341 = vmul.f32 %v1211, %v1277
        %v1342 = vmul.f32 %v1035, %v1278
        %v1343 = vmul.f32 %v1213, %v1279
        %v1344 = vmul.f32 %v1038, %v1280
        %v1345 = vmul.f32 %v1216, %v1281
        %v1346 = vmul.f32 %v1040, %v1282
        %v1347 = vmul.f32 %v1218, %v1283
        %v1348 = vmul.f32 %v1284, 0.044715
        %v1349 = vmul.f32 %v1285, 0.044715
        %v1350 = vmul.f32 %v1286, 0.044715
        %v1351 = vmul.f32 %v1287, 0.044715
        %v1352 = vmul.f32 %v1288, 0.044715
        %v1353 = vmul.f32 %v1289, 0.044715
        %v1354 = vmul.f32 %v1290, 0.044715
        %v1355 = vmul.f32 %v1291, 0.044715
        %v1356 = vmul.f32 %v1292, 0.044715
        %v1357 = vmul.f32 %v1293, 0.044715
        %v1358 = vmul.f32 %v1294, 0.044715
        %v1359 = vmul.f32 %v1295, 0.044715
        %v1360 = vmul.f32 %v1296, 0.044715
        %v1361 = vmul.f32 %v1297, 0.044715
        %v1362 = vmul.f32 %v1298, 0.044715
        %v1363 = vmul.f32 %v1299, 0.044715
        %v1364 = vmul.f32 %v1300, 0.044715
        %v1365 = vmul.f32 %v1301, 0.044715
        %v1366 = vmul.f32 %v1302, 0.044715
        %v1367 = vmul.f32 %v1303, 0.044715
        %v1368 = vmul.f32 %v1304, 0.044715
        %v1369 = vmul.f32 %v1305, 0.044715
        %v1370 = vmul.f32 %v1306, 0.044715
        %v1371 = vmul.f32 %v1307, 0.044715
        %v1372 = vmul.f32 %v1308, 0.044715
        %v1373 = vmul.f32 %v1309, 0.044715
        %v1374 = vmul.f32 %v1310, 0.044715
        %v1375 = vmul.f32 %v1311, 0.044715
        %v1376 = vmul.f32 %v1312, 0.044715
        %v1377 = vmul.f32 %v1313, 0.044715
        %v1378 = vmul.f32 %v1314, 0.044715
        %v1379 = vmul.f32 %v1315, 0.044715
        %v1380 = vmul.f32 %v1316, 0.044715
        %v1381 = vmul.f32 %v1317, 0.044715
        %v1382 = vmul.f32 %v1318, 0.044715
        %v1383 = vmul.f32 %v1319, 0.044715
        %v1384 = vmul.f32 %v1320, 0.044715
        %v1385 = vmul.f32 %v1321, 0.044715
        %v1386 = vmul.f32 %v1322, 0.044715
        %v1387 = vmul.f32 %v1323, 0.044715
        %v1388 = vmul.f32 %v1324, 0.044715
        %v1389 = vmul.f32 %v1325, 0.044715
        %v1390 = vmul.f32 %v1326, 0.044715
        %v1391 = vmul.f32 %v1327, 0.044715
        %v1392 = vmul.f32 %v1328, 0.044715
        %v1393 = vmul.f32 %v1329, 0.044715
        %v1394 = vmul.f32 %v1330, 0.044715
        %v1395 = vmul.f32 %v1331, 0.044715
        %v1396 = vmul.f32 %v1332, 0.044715
        %v1397 = vmul.f32 %v1333, 0.044715
        %v1398 = vmul.f32 %v1334, 0.044715
        %v1399 = vmul.f32 %v1335, 0.044715
        %v1400 = vmul.f32 %v1336, 0.044715
        %v1401 = vmul.f32 %v1337, 0.044715
        %v1402 = vmul.f32 %v1338, 0.044715
        %v1403 = vmul.f32 %v1339, 0.044715
        %v1404 = vmul.f32 %v1340, 0.044715
        %v1405 = vmul.f32 %v1341, 0.044715
        %v1406 = vmul.f32 %v1342, 0.044715
        %v1407 = vmul.f32 %v1343, 0.044715
        %v1408 = vmul.f32 %v1344, 0.044715
        %v1409 = vmul.f32 %v1345, 0.044715
        %v1410 = vmul.f32 %v1346, 0.044715
        %v1411 = vmul.f32 %v1347, 0.044715
        %v1412 = vadd.f32 %v963, %v1348
        %v1413 = vadd.f32 %v1141, %v1349
        %v1414 = vadd.f32 %v965, %v1350
        %v1415 = vadd.f32 %v1143, %v1351
        %v1416 = vadd.f32 %v968, %v1352
        %v1417 = vadd.f32 %v1146, %v1353
        %v1418 = vadd.f32 %v970, %v1354
        %v1419 = vadd.f32 %v1148, %v1355
        %v1420 = vadd.f32 %v973, %v1356
        %v1421 = vadd.f32 %v1151, %v1357
        %v1422 = vadd.f32 %v975, %v1358
        %v1423 = vadd.f32 %v1153, %v1359
        %v1424 = vadd.f32 %v978, %v1360
        %v1425 = vadd.f32 %v1156, %v1361
        %v1426 = vadd.f32 %v980, %v1362
        %v1427 = vadd.f32 %v1158, %v1363
        %v1428 = vadd.f32 %v983, %v1364
        %v1429 = vadd.f32 %v1161, %v1365
        %v1430 = vadd.f32 %v985, %v1366
        %v1431 = vadd.f32 %v1163, %v1367
        %v1432 = vadd.f32 %v988, %v1368
        %v1433 = vadd.f32 %v1166, %v1369
        %v1434 = vadd.f32 %v990, %v1370
        %v1435 = vadd.f32 %v1168, %v1371
        %v1436 = vadd.f32 %v993, %v1372
        %v1437 = vadd.f32 %v1171, %v1373
        %v1438 = vadd.f32 %v995, %v1374
        %v1439 = vadd.f32 %v1173, %v1375
        %v1440 = vadd.f32 %v998, %v1376
        %v1441 = vadd.f32 %v1176, %v1377
        %v1442 = vadd.f32 %v1000, %v1378
        %v1443 = vadd.f32 %v1178, %v1379
        %v1444 = vadd.f32 %v1003, %v1380
        %v1445 = vadd.f32 %v1181, %v1381
        %v1446 = vadd.f32 %v1005, %v1382
        %v1447 = vadd.f32 %v1183, %v1383
        %v1448 = vadd.f32 %v1008, %v1384
        %v1449 = vadd.f32 %v1186, %v1385
        %v1450 = vadd.f32 %v1010, %v1386
        %v1451 = vadd.f32 %v1188, %v1387
        %v1452 = vadd.f32 %v1013, %v1388
        %v1453 = vadd.f32 %v1191, %v1389
        %v1454 = vadd.f32 %v1015, %v1390
        %v1455 = vadd.f32 %v1193, %v1391
        %v1456 = vadd.f32 %v1018, %v1392
        %v1457 = vadd.f32 %v1196, %v1393
        %v1458 = vadd.f32 %v1020, %v1394
        %v1459 = vadd.f32 %v1198, %v1395
        %v1460 = vadd.f32 %v1023, %v1396
        %v1461 = vadd.f32 %v1201, %v1397
        %v1462 = vadd.f32 %v1025, %v1398
        %v1463 = vadd.f32 %v1203, %v1399
        %v1464 = vadd.f32 %v1028, %v1400
        %v1465 = vadd.f32 %v1206, %v1401
        %v1466 = vadd.f32 %v1030, %v1402
        %v1467 = vadd.f32 %v1208, %v1403
        %v1468 = vadd.f32 %v1033, %v1404
        %v1469 = vadd.f32 %v1211, %v1405
        %v1470 = vadd.f32 %v1035, %v1406
        %v1471 = vadd.f32 %v1213, %v1407
        %v1472 = vadd.f32 %v1038, %v1408
        %v1473 = vadd.f32 %v1216, %v1409
        %v1474 = vadd.f32 %v1040, %v1410
        %v1475 = vadd.f32 %v1218, %v1411
        %v1476 = vmul.f32 %v1412, 0.7978846
        %v1477 = vmul.f32 %v1413, 0.7978846
        %v1478 = vmul.f32 %v1414, 0.7978846
        %v1479 = vmul.f32 %v1415, 0.7978846
        %v1480 = vmul.f32 %v1416, 0.7978846
        %v1481 = vmul.f32 %v1417, 0.7978846
        %v1482 = vmul.f32 %v1418, 0.7978846
        %v1483 = vmul.f32 %v1419, 0.7978846
        %v1484 = vmul.f32 %v1420, 0.7978846
        %v1485 = vmul.f32 %v1421, 0.7978846
        %v1486 = vmul.f32 %v1422, 0.7978846
        %v1487 = vmul.f32 %v1423, 0.7978846
        %v1488 = vmul.f32 %v1424, 0.7978846
        %v1489 = vmul.f32 %v1425, 0.7978846
        %v1490 = vmul.f32 %v1426, 0.7978846
        %v1491 = vmul.f32 %v1427, 0.7978846
        %v1492 = vmul.f32 %v1428, 0.7978846
        %v1493 = vmul.f32 %v1429, 0.7978846
        %v1494 = vmul.f32 %v1430, 0.7978846
        %v1495 = vmul.f32 %v1431, 0.7978846
        %v1496 = vmul.f32 %v1432, 0.7978846
        %v1497 = vmul.f32 %v1433, 0.7978846
        %v1498 = vmul.f32 %v1434, 0.7978846
        %v1499 = vmul.f32 %v1435, 0.7978846
        %v1500 = vmul.f32 %v1436, 0.7978846
        %v1501 = vmul.f32 %v1437, 0.7978846
        %v1502 = vmul.f32 %v1438, 0.7978846
        %v1503 = vmul.f32 %v1439, 0.7978846
        %v1504 = vmul.f32 %v1440, 0.7978846
        %v1505 = vmul.f32 %v1441, 0.7978846
        %v1506 = vmul.f32 %v1442, 0.7978846
        %v1507 = vmul.f32 %v1443, 0.7978846
        %v1508 = vmul.f32 %v1444, 0.7978846
        %v1509 = vmul.f32 %v1445, 0.7978846
        %v1510 = vmul.f32 %v1446, 0.7978846
        %v1511 = vmul.f32 %v1447, 0.7978846
        %v1512 = vmul.f32 %v1448, 0.7978846
        %v1513 = vmul.f32 %v1449, 0.7978846
        %v1514 = vmul.f32 %v1450, 0.7978846
        %v1515 = vmul.f32 %v1451, 0.7978846
        %v1516 = vmul.f32 %v1452, 0.7978846
        %v1517 = vmul.f32 %v1453, 0.7978846
        %v1518 = vmul.f32 %v1454, 0.7978846
        %v1519 = vmul.f32 %v1455, 0.7978846
        %v1520 = vmul.f32 %v1456, 0.7978846
        %v1521 = vmul.f32 %v1457, 0.7978846
        %v1522 = vmul.f32 %v1458, 0.7978846
        %v1523 = vmul.f32 %v1459, 0.7978846
        %v1524 = vmul.f32 %v1460, 0.7978846
        %v1525 = vmul.f32 %v1461, 0.7978846
        %v1526 = vmul.f32 %v1462, 0.7978846
        %v1527 = vmul.f32 %v1463, 0.7978846
        %v1528 = vmul.f32 %v1464, 0.7978846
        %v1529 = vmul.f32 %v1465, 0.7978846
        %v1530 = vmul.f32 %v1466, 0.7978846
        %v1531 = vmul.f32 %v1467, 0.7978846
        %v1532 = vmul.f32 %v1468, 0.7978846
        %v1533 = vmul.f32 %v1469, 0.7978846
        %v1534 = vmul.f32 %v1470, 0.7978846
        %v1535 = vmul.f32 %v1471, 0.7978846
        %v1536 = vmul.f32 %v1472, 0.7978846
        %v1537 = vmul.f32 %v1473, 0.7978846
        %v1538 = vmul.f32 %v1474, 0.7978846
        %v1539 = vmul.f32 %v1475, 0.7978846
        %v1540 = vtanh.pop %v1476
        %v1541 = vtanh.pop %v1477
        %v1542 = vtanh.pop %v1478
        %v1543 = vtanh.pop %v1479
        %v1544 = vtanh.pop %v1480
        %v1545 = vtanh.pop %v1481
        %v1546 = vtanh.pop %v1482
        %v1547 = vtanh.pop %v1483
        %v1548 = vtanh.pop %v1484
        %v1549 = vtanh.pop %v1485
        %v1550 = vtanh.pop %v1486
        %v1551 = vtanh.pop %v1487
        %v1552 = vtanh.pop %v1488
        %v1553 = vtanh.pop %v1489
        %v1554 = vtanh.pop %v1490
        %v1555 = vtanh.pop %v1491
        %v1556 = vtanh.pop %v1492
        %v1557 = vtanh.pop %v1493
        %v1558 = vtanh.pop %v1494
        %v1559 = vtanh.pop %v1495
        %v1560 = vtanh.pop %v1496
        %v1561 = vtanh.pop %v1497
        %v1562 = vtanh.pop %v1498
        %v1563 = vtanh.pop %v1499
        %v1564 = vtanh.pop %v1500
        %v1565 = vtanh.pop %v1501
        %v1566 = vtanh.pop %v1502
        %v1567 = vtanh.pop %v1503
        %v1568 = vtanh.pop %v1504
        %v1569 = vtanh.pop %v1505
        %v1570 = vtanh.pop %v1506
        %v1571 = vtanh.pop %v1507
        %v1572 = vtanh.pop %v1508
        %v1573 = vtanh.pop %v1509
        %v1574 = vtanh.pop %v1510
        %v1575 = vtanh.pop %v1511
        %v1576 = vtanh.pop %v1512
        %v1577 = vtanh.pop %v1513
        %v1578 = vtanh.pop %v1514
        %v1579 = vtanh.pop %v1515
        %v1580 = vtanh.pop %v1516
        %v1581 = vtanh.pop %v1517
        %v1582 = vtanh.pop %v1518
        %v1583 = vtanh.pop %v1519
        %v1584 = vtanh.pop %v1520
        %v1585 = vtanh.pop %v1521
        %v1586 = vtanh.pop %v1522
        %v1587 = vtanh.pop %v1523
        %v1588 = vtanh.pop %v1524
        %v1589 = vtanh.pop %v1525
        %v1590 = vtanh.pop %v1526
        %v1591 = vtanh.pop %v1527
        %v1592 = vtanh.pop %v1528
        %v1593 = vtanh.pop %v1529
        %v1594 = vtanh.pop %v1530
        %v1595 = vtanh.pop %v1531
        %v1596 = vtanh.pop %v1532
        %v1597 = vtanh.pop %v1533
        %v1598 = vtanh.pop %v1534
        %v1599 = vtanh.pop %v1535
        %v1600 = vtanh.pop %v1536
        %v1601 = vtanh.pop %v1537
        %v1602 = vtanh.pop %v1538
        %v1603 = vtanh.pop %v1539
        %v1604 = vadd.f32 %v1540, 1.0
        %v1605 = vadd.f32 %v1541, 1.0
        %v1606 = vadd.f32 %v1542, 1.0
        %v1607 = vadd.f32 %v1543, 1.0
        %v1608 = vadd.f32 %v1544, 1.0
        %v1609 = vadd.f32 %v1545, 1.0
        %v1610 = vadd.f32 %v1546, 1.0
        %v1611 = vadd.f32 %v1547, 1.0
        %v1612 = vadd.f32 %v1548, 1.0
        %v1613 = vadd.f32 %v1549, 1.0
        %v1614 = vadd.f32 %v1550, 1.0
        %v1615 = vadd.f32 %v1551, 1.0
        %v1616 = vadd.f32 %v1552, 1.0
        %v1617 = vadd.f32 %v1553, 1.0
        %v1618 = vadd.f32 %v1554, 1.0
        %v1619 = vadd.f32 %v1555, 1.0
        %v1620 = vadd.f32 %v1556, 1.0
        %v1621 = vadd.f32 %v1557, 1.0
        %v1622 = vadd.f32 %v1558, 1.0
        %v1623 = vadd.f32 %v1559, 1.0
        %v1624 = vadd.f32 %v1560, 1.0
        %v1625 = vadd.f32 %v1561, 1.0
        %v1626 = vadd.f32 %v1562, 1.0
        %v1627 = vadd.f32 %v1563, 1.0
        %v1628 = vadd.f32 %v1564, 1.0
        %v1629 = vadd.f32 %v1565, 1.0
        %v1630 = vadd.f32 %v1566, 1.0
        %v1631 = vadd.f32 %v1567, 1.0
        %v1632 = vadd.f32 %v1568, 1.0
        %v1633 = vadd.f32 %v1569, 1.0
        %v1634 = vadd.f32 %v1570, 1.0
        %v1635 = vadd.f32 %v1571, 1.0
        %v1636 = vadd.f32 %v1572, 1.0
        %v1637 = vadd.f32 %v1573, 1.0
        %v1638 = vadd.f32 %v1574, 1.0
        %v1639 = vadd.f32 %v1575, 1.0
        %v1640 = vadd.f32 %v1576, 1.0
        %v1641 = vadd.f32 %v1577, 1.0
        %v1642 = vadd.f32 %v1578, 1.0
        %v1643 = vadd.f32 %v1579, 1.0
        %v1644 = vadd.f32 %v1580, 1.0
        %v1645 = vadd.f32 %v1581, 1.0
        %v1646 = vadd.f32 %v1582, 1.0
        %v1647 = vadd.f32 %v1583, 1.0
        %v1648 = vadd.f32 %v1584, 1.0
        %v1649 = vadd.f32 %v1585, 1.0
        %v1650 = vadd.f32 %v1586, 1.0
        %v1651 = vadd.f32 %v1587, 1.0
        %v1652 = vadd.f32 %v1588, 1.0
        %v1653 = vadd.f32 %v1589, 1.0
        %v1654 = vadd.f32 %v1590, 1.0
        %v1655 = vadd.f32 %v1591, 1.0
        %v1656 = vadd.f32 %v1592, 1.0
        %v1657 = vadd.f32 %v1593, 1.0
        %v1658 = vadd.f32 %v1594, 1.0
        %v1659 = vadd.f32 %v1595, 1.0
        %v1660 = vadd.f32 %v1596, 1.0
        %v1661 = vadd.f32 %v1597, 1.0
        %v1662 = vadd.f32 %v1598, 1.0
        %v1663 = vadd.f32 %v1599, 1.0
        %v1664 = vadd.f32 %v1600, 1.0
        %v1665 = vadd.f32 %v1601, 1.0
        %v1666 = vadd.f32 %v1602, 1.0
        %v1667 = vadd.f32 %v1603, 1.0
        %v1668 = vmul.f32 %v1604, 0.5
        %v1669 = vmul.f32 %v1605, 0.5
        %v1670 = vmul.f32 %v1606, 0.5
        %v1671 = vmul.f32 %v1607, 0.5
        %v1672 = vmul.f32 %v1608, 0.5
        %v1673 = vmul.f32 %v1609, 0.5
        %v1674 = vmul.f32 %v1610, 0.5
        %v1675 = vmul.f32 %v1611, 0.5
        %v1676 = vmul.f32 %v1612, 0.5
        %v1677 = vmul.f32 %v1613, 0.5
        %v1678 = vmul.f32 %v1614, 0.5
        %v1679 = vmul.f32 %v1615, 0.5
        %v1680 = vmul.f32 %v1616, 0.5
        %v1681 = vmul.f32 %v1617, 0.5
        %v1682 = vmul.f32 %v1618, 0.5
        %v1683 = vmul.f32 %v1619, 0.5
        %v1684 = vmul.f32 %v1620, 0.5
        %v1685 = vmul.f32 %v1621, 0.5
        %v1686 = vmul.f32 %v1622, 0.5
        %v1687 = vmul.f32 %v1623, 0.5
        %v1688 = vmul.f32 %v1624, 0.5
        %v1689 = vmul.f32 %v1625, 0.5
        %v1690 = vmul.f32 %v1626, 0.5
        %v1691 = vmul.f32 %v1627, 0.5
        %v1692 = vmul.f32 %v1628, 0.5
        %v1693 = vmul.f32 %v1629, 0.5
        %v1694 = vmul.f32 %v1630, 0.5
        %v1695 = vmul.f32 %v1631, 0.5
        %v1696 = vmul.f32 %v1632, 0.5
        %v1697 = vmul.f32 %v1633, 0.5
        %v1698 = vmul.f32 %v1634, 0.5
        %v1699 = vmul.f32 %v1635, 0.5
        %v1700 = vmul.f32 %v1636, 0.5
        %v1701 = vmul.f32 %v1637, 0.5
        %v1702 = vmul.f32 %v1638, 0.5
        %v1703 = vmul.f32 %v1639, 0.5
        %v1704 = vmul.f32 %v1640, 0.5
        %v1705 = vmul.f32 %v1641, 0.5
        %v1706 = vmul.f32 %v1642, 0.5
        %v1707 = vmul.f32 %v1643, 0.5
        %v1708 = vmul.f32 %v1644, 0.5
        %v1709 = vmul.f32 %v1645, 0.5
        %v1710 = vmul.f32 %v1646, 0.5
        %v1711 = vmul.f32 %v1647, 0.5
        %v1712 = vmul.f32 %v1648, 0.5
        %v1713 = vmul.f32 %v1649, 0.5
        %v1714 = vmul.f32 %v1650, 0.5
        %v1715 = vmul.f32 %v1651, 0.5
        %v1716 = vmul.f32 %v1652, 0.5
        %v1717 = vmul.f32 %v1653, 0.5
        %v1718 = vmul.f32 %v1654, 0.5
        %v1719 = vmul.f32 %v1655, 0.5
        %v1720 = vmul.f32 %v1656, 0.5
        %v1721 = vmul.f32 %v1657, 0.5
        %v1722 = vmul.f32 %v1658, 0.5
        %v1723 = vmul.f32 %v1659, 0.5
        %v1724 = vmul.f32 %v1660, 0.5
        %v1725 = vmul.f32 %v1661, 0.5
        %v1726 = vmul.f32 %v1662, 0.5
        %v1727 = vmul.f32 %v1663, 0.5
        %v1728 = vmul.f32 %v1664, 0.5
        %v1729 = vmul.f32 %v1665, 0.5
        %v1730 = vmul.f32 %v1666, 0.5
        %v1731 = vmul.f32 %v1667, 0.5
        %v1732 = vmul.f32 %v963, %v1668
        %v1733 = vmul.f32 %v1141, %v1669
        %v1734 = vmul.f32 %v965, %v1670
        %v1735 = vmul.f32 %v1143, %v1671
        %v1736 = vmul.f32 %v968, %v1672
        %v1737 = vmul.f32 %v1146, %v1673
        %v1738 = vmul.f32 %v970, %v1674
        %v1739 = vmul.f32 %v1148, %v1675
        %v1740 = vmul.f32 %v973, %v1676
        %v1741 = vmul.f32 %v1151, %v1677
        %v1742 = vmul.f32 %v975, %v1678
        %v1743 = vmul.f32 %v1153, %v1679
        %v1744 = vmul.f32 %v978, %v1680
        %v1745 = vmul.f32 %v1156, %v1681
        %v1746 = vmul.f32 %v980, %v1682
        %v1747 = vmul.f32 %v1158, %v1683
        %v1748 = vmul.f32 %v983, %v1684
        %v1749 = vmul.f32 %v1161, %v1685
        %v1750 = vmul.f32 %v985, %v1686
        %v1751 = vmul.f32 %v1163, %v1687
        %v1752 = vmul.f32 %v988, %v1688
        %v1753 = vmul.f32 %v1166, %v1689
        %v1754 = vmul.f32 %v990, %v1690
        %v1755 = vmul.f32 %v1168, %v1691
        %v1756 = vmul.f32 %v993, %v1692
        %v1757 = vmul.f32 %v1171, %v1693
        %v1758 = vmul.f32 %v995, %v1694
        %v1759 = vmul.f32 %v1173, %v1695
        %v1760 = vmul.f32 %v998, %v1696
        %v1761 = vmul.f32 %v1176, %v1697
        %v1762 = vmul.f32 %v1000, %v1698
        %v1763 = vmul.f32 %v1178, %v1699
        %v1764 = vmul.f32 %v1003, %v1700
        %v1765 = vmul.f32 %v1181, %v1701
        %v1766 = vmul.f32 %v1005, %v1702
        %v1767 = vmul.f32 %v1183, %v1703
        %v1768 = vmul.f32 %v1008, %v1704
        %v1769 = vmul.f32 %v1186, %v1705
        %v1770 = vmul.f32 %v1010, %v1706
        %v1771 = vmul.f32 %v1188, %v1707
        %v1772 = vmul.f32 %v1013, %v1708
        %v1773 = vmul.f32 %v1191, %v1709
        %v1774 = vmul.f32 %v1015, %v1710
        %v1775 = vmul.f32 %v1193, %v1711
        %v1776 = vmul.f32 %v1018, %v1712
        %v1777 = vmul.f32 %v1196, %v1713
        %v1778 = vmul.f32 %v1020, %v1714
        %v1779 = vmul.f32 %v1198, %v1715
        %v1780 = vmul.f32 %v1023, %v1716
        %v1781 = vmul.f32 %v1201, %v1717
        %v1782 = vmul.f32 %v1025, %v1718
        %v1783 = vmul.f32 %v1203, %v1719
        %v1784 = vmul.f32 %v1028, %v1720
        %v1785 = vmul.f32 %v1206, %v1721
        %v1786 = vmul.f32 %v1030, %v1722
        %v1787 = vmul.f32 %v1208, %v1723
        %v1788 = vmul.f32 %v1033, %v1724
        %v1789 = vmul.f32 %v1211, %v1725
        %v1790 = vmul.f32 %v1035, %v1726
        %v1791 = vmul.f32 %v1213, %v1727
        %v1792 = vmul.f32 %v1038, %v1728
        %v1793 = vmul.f32 %v1216, %v1729
        %v1794 = vmul.f32 %v1040, %v1730
        %v1795 = vmul.f32 %v1218, %v1731
        %v1796 = vpack.c.bf16 %v1734, %v1732
        %v1797 = vpack.c.bf16 %v1735, %v1733
        %v1798 = vpack.c.bf16 %v1738, %v1736
        %v1799 = vpack.c.bf16 %v1739, %v1737
        %v1800 = vpack.c.bf16 %v1742, %v1740
        %v1801 = vpack.c.bf16 %v1743, %v1741
        %v1802 = vpack.c.bf16 %v1746, %v1744
        %v1803 = vpack.c.bf16 %v1747, %v1745
        %v1804 = vpack.c.bf16 %v1750, %v1748
        %v1805 = vpack.c.bf16 %v1751, %v1749
        %v1806 = vpack.c.bf16 %v1754, %v1752
        %v1807 = vpack.c.bf16 %v1755, %v1753
        %v1808 = vpack.c.bf16 %v1758, %v1756
        %v1809 = vpack.c.bf16 %v1759, %v1757
        %v1810 = vpack.c.bf16 %v1762, %v1760
        %v1811 = vpack.c.bf16 %v1763, %v1761
        %v1812 = vpack.c.bf16 %v1766, %v1764
        %v1813 = vpack.c.bf16 %v1767, %v1765
        %v1814 = vpack.c.bf16 %v1770, %v1768
        %v1815 = vpack.c.bf16 %v1771, %v1769
        %v1816 = vpack.c.bf16 %v1774, %v1772
        %v1817 = vpack.c.bf16 %v1775, %v1773
        %v1818 = vpack.c.bf16 %v1778, %v1776
        %v1819 = vpack.c.bf16 %v1779, %v1777
        %v1820 = vpack.c.bf16 %v1782, %v1780
        %v1821 = vpack.c.bf16 %v1783, %v1781
        %v1822 = vpack.c.bf16 %v1786, %v1784
        %v1823 = vpack.c.bf16 %v1787, %v1785
        %v1824 = vpack.c.bf16 %v1790, %v1788
        %v1825 = vpack.c.bf16 %v1791, %v1789
        %v1826 = vpack.c.bf16 %v1794, %v1792
        %v1827 = vpack.c.bf16 %v1795, %v1793
        %v1828 = vld [vmem:[#allocation2] sm:$0xff]
        %v1829 = vld [vmem:[#allocation2 + $0x8] sm:$0xff]
        %v1830 = vld [vmem:[#allocation2 + $0x10] sm:$0xff]
        %v1831 = vld [vmem:[#allocation2 + $0x18] sm:$0xff]
        %v1832 = vld [vmem:[#allocation2 + $0x20] sm:$0xff]
        %v1833 = vld [vmem:[#allocation2 + $0x28] sm:$0xff]
        %v1834 = vld [vmem:[#allocation2 + $0x30] sm:$0xff]
        %v1835 = vld [vmem:[#allocation2 + $0x38] sm:$0xff]
        %v1836 = vld [vmem:[#allocation2 + $0x40] sm:$0xff]
        %v1837 = vld [vmem:[#allocation2 + $0x48] sm:$0xff]
        %v1838 = vld [vmem:[#allocation2 + $0x50] sm:$0xff]
        %v1839 = vld [vmem:[#allocation2 + $0x58] sm:$0xff]
        %v1840 = vld [vmem:[#allocation2 + $0x60] sm:$0xff]
        %v1841 = vld [vmem:[#allocation2 + $0x68] sm:$0xff]
        %v1842 = vld [vmem:[#allocation2 + $0x70] sm:$0xff]
        %v1843 = vld [vmem:[#allocation2 + $0x78] sm:$0xff]
        %v1844 = vld [vmem:[#allocation2 + $0x80] sm:$0xff]
        %v1845 = vld [vmem:[#allocation2 + $0x88] sm:$0xff]
        %v1846 = vld [vmem:[#allocation2 + $0x90] sm:$0xff]
        %v1847 = vld [vmem:[#allocation2 + $0x98] sm:$0xff]
        %v1848 = vld [vmem:[#allocation2 + $0xa0] sm:$0xff]
        %v1849 = vld [vmem:[#allocation2 + $0xa8] sm:$0xff]
        %v1850 = vld [vmem:[#allocation2 + $0xb0] sm:$0xff]
        %v1851 = vld [vmem:[#allocation2 + $0xb8] sm:$0xff]
        %v1852 = vld [vmem:[#allocation2 + $0xc0] sm:$0xff]
        %v1853 = vld [vmem:[#allocation2 + $0xc8] sm:$0xff]
        %v1854 = vld [vmem:[#allocation2 + $0xd0] sm:$0xff]
        %v1855 = vld [vmem:[#allocation2 + $0xd8] sm:$0xff]
        %v1856 = vld [vmem:[#allocation2 + $0xe0] sm:$0xff]
        %v1857 = vld [vmem:[#allocation2 + $0xe8] sm:$0xff]
        %v1858 = vld [vmem:[#allocation2 + $0xf0] sm:$0xff]
        %v1859 = vld [vmem:[#allocation2 + $0xf8] sm:$0xff]
        %v1860 = vld [vmem:[#allocation2 + $0x100] sm:$0xff]
        %v1861 = vld [vmem:[#allocation2 + $0x108] sm:$0xff]
        %v1862 = vld [vmem:[#allocation2 + $0x110] sm:$0xff]
        %v1863 = vld [vmem:[#allocation2 + $0x118] sm:$0xff]
        %v1864 = vld [vmem:[#allocation2 + $0x120] sm:$0xff]
        %v1865 = vld [vmem:[#allocation2 + $0x128] sm:$0xff]
        %v1866 = vld [vmem:[#allocation2 + $0x130] sm:$0xff]
        %v1867 = vld [vmem:[#allocation2 + $0x138] sm:$0xff]
        %v1868 = vld [vmem:[#allocation2 + $0x140] sm:$0xff]
        %v1869 = vld [vmem:[#allocation2 + $0x148] sm:$0xff]
        %v1870 = vld [vmem:[#allocation2 + $0x150] sm:$0xff]
        %v1871 = vld [vmem:[#allocation2 + $0x158] sm:$0xff]
        %v1872 = vld [vmem:[#allocation2 + $0x160] sm:$0xff]
        %v1873 = vld [vmem:[#allocation2 + $0x168] sm:$0xff]
        %v1874 = vld [vmem:[#allocation2 + $0x170] sm:$0xff]
        %v1875 = vld [vmem:[#allocation2 + $0x178] sm:$0xff]
        %v1876 = vld [vmem:[#allocation2 + $0x180] sm:$0xff]
        %v1877 = vld [vmem:[#allocation2 + $0x188] sm:$0xff]
        %v1878 = vld [vmem:[#allocation2 + $0x190] sm:$0xff]
        %v1879 = vld [vmem:[#allocation2 + $0x198] sm:$0xff]
        %v1880 = vld [vmem:[#allocation2 + $0x1a0] sm:$0xff]
        %v1881 = vld [vmem:[#allocation2 + $0x1a8] sm:$0xff]
        %v1882 = vld [vmem:[#allocation2 + $0x1b0] sm:$0xff]
        %v1883 = vld [vmem:[#allocation2 + $0x1b8] sm:$0xff]
        %v1884 = vld [vmem:[#allocation2 + $0x1c0] sm:$0xff]
        %v1885 = vld [vmem:[#allocation2 + $0x1c8] sm:$0xff]
        %v1886 = vld [vmem:[#allocation2 + $0x1d0] sm:$0xff]
        %v1887 = vld [vmem:[#allocation2 + $0x1d8] sm:$0xff]
        %v1888 = vld [vmem:[#allocation2 + $0x1e0] sm:$0xff]
        %v1889 = vld [vmem:[#allocation2 + $0x1e8] sm:$0xff]
        %v1890 = vld [vmem:[#allocation2 + $0x1f0] sm:$0xff]
        %v1891 = vld [vmem:[#allocation2 + $0x1f8] sm:$0xff]
        %v1924 = vunpack.c.l.b16 %v512
        %v1925 = vunpack.c.h.b16 %v512
        %v1926 = vunpack.c.l.b16 %v513
        %v1927 = vunpack.c.h.b16 %v513
        %v1928 = vunpack.c.l.b16 %v514
        %v1929 = vunpack.c.h.b16 %v514
        %v1930 = vunpack.c.l.b16 %v515
        %v1931 = vunpack.c.h.b16 %v515
        %v1932 = vunpack.c.l.b16 %v516
        %v1933 = vunpack.c.h.b16 %v516
        %v1934 = vunpack.c.l.b16 %v517
        %v1935 = vunpack.c.h.b16 %v517
        %v1936 = vunpack.c.l.b16 %v518
        %v1937 = vunpack.c.h.b16 %v518
        %v1938 = vunpack.c.l.b16 %v519
        %v1939 = vunpack.c.h.b16 %v519
        %v1940 = vunpack.c.l.b16 %v520
        %v1941 = vunpack.c.h.b16 %v520
        %v1942 = vunpack.c.l.b16 %v521
        %v1943 = vunpack.c.h.b16 %v521
        %v1944 = vunpack.c.l.b16 %v522
        %v1945 = vunpack.c.h.b16 %v522
        %v1946 = vunpack.c.l.b16 %v523
        %v1947 = vunpack.c.h.b16 %v523
        %v1948 = vunpack.c.l.b16 %v524
        %v1949 = vunpack.c.h.b16 %v524
        %v1950 = vunpack.c.l.b16 %v525
        %v1951 = vunpack.c.h.b16 %v525
        %v1952 = vunpack.c.l.b16 %v526
        %v1953 = vunpack.c.h.b16 %v526
        %v1954 = vunpack.c.l.b16 %v527
        %v1955 = vunpack.c.h.b16 %v527
        %v1956 = vunpack.c.l.b16 %v528
        %v1957 = vunpack.c.h.b16 %v528
        %v1958 = vunpack.c.l.b16 %v529
        %v1959 = vunpack.c.h.b16 %v529
        %v1960 = vunpack.c.l.b16 %v530
        %v1961 = vunpack.c.h.b16 %v530
        %v1962 = vunpack.c.l.b16 %v531
        %v1963 = vunpack.c.h.b16 %v531
        %v1964 = vunpack.c.l.b16 %v532
        %v1965 = vunpack.c.h.b16 %v532
        %v1966 = vunpack.c.l.b16 %v533
        %v1967 = vunpack.c.h.b16 %v533
        %v1968 = vunpack.c.l.b16 %v534
        %v1969 = vunpack.c.h.b16 %v534
        %v1970 = vunpack.c.l.b16 %v535
        %v1971 = vunpack.c.h.b16 %v535
        %v1972 = vunpack.c.l.b16 %v536
        %v1973 = vunpack.c.h.b16 %v536
        %v1974 = vunpack.c.l.b16 %v537
        %v1975 = vunpack.c.h.b16 %v537
        %v1976 = vunpack.c.l.b16 %v538
        %v1977 = vunpack.c.h.b16 %v538
        %v1978 = vunpack.c.l.b16 %v539
        %v1979 = vunpack.c.h.b16 %v539
        %v1980 = vunpack.c.l.b16 %v540
        %v1981 = vunpack.c.h.b16 %v540
        %v1982 = vunpack.c.l.b16 %v541
        %v1983 = vunpack.c.h.b16 %v541
        %v1984 = vunpack.c.l.b16 %v542
        %v1985 = vunpack.c.h.b16 %v542
        %v1986 = vunpack.c.l.b16 %v543
        %v1987 = vunpack.c.h.b16 %v543
        %v1988 = vpack.c.b16 %v1926, %v1924
        %v1989 = vpack.c.b16 %v1927, %v1925
        %v1990 = vpack.c.b16 %v1930, %v1928
        %v1991 = vpack.c.b16 %v1931, %v1929
        %v1992 = vpack.c.b16 %v1934, %v1932
        %v1993 = vpack.c.b16 %v1935, %v1933
        %v1994 = vpack.c.b16 %v1938, %v1936
        %v1995 = vpack.c.b16 %v1939, %v1937
        %v1996 = vpack.c.b16 %v1942, %v1940
        %v1997 = vpack.c.b16 %v1943, %v1941
        %v1998 = vpack.c.b16 %v1946, %v1944
        %v1999 = vpack.c.b16 %v1947, %v1945
        %v2000 = vpack.c.b16 %v1950, %v1948
        %v2001 = vpack.c.b16 %v1951, %v1949
        %v2002 = vpack.c.b16 %v1954, %v1952
        %v2003 = vpack.c.b16 %v1955, %v1953
        %v2004 = vpack.c.b16 %v1958, %v1956
        %v2005 = vpack.c.b16 %v1959, %v1957
        %v2006 = vpack.c.b16 %v1962, %v1960
        %v2007 = vpack.c.b16 %v1963, %v1961
        %v2008 = vpack.c.b16 %v1966, %v1964
        %v2009 = vpack.c.b16 %v1967, %v1965
        %v2010 = vpack.c.b16 %v1970, %v1968
        %v2011 = vpack.c.b16 %v1971, %v1969
        %v2012 = vpack.c.b16 %v1974, %v1972
        %v2013 = vpack.c.b16 %v1975, %v1973
        %v2014 = vpack.c.b16 %v1978, %v1976
        %v2015 = vpack.c.b16 %v1979, %v1977
        %v2016 = vpack.c.b16 %v1982, %v1980
        %v2017 = vpack.c.b16 %v1983, %v1981
        %v2018 = vpack.c.b16 %v1986, %v1984
        %v2019 = vpack.c.b16 %v1987, %v1985
        %2052 = vmatpush.bf16.msra.mxu0 %v2002
        %2053 = vmatpush.bf16.msra.mxu0 %v2000
        %2054 = vmatpush.bf16.msra.mxu0 %v1998
        %2055 = vmatpush.bf16.msra.mxu0 %v1996
        %2056 = vmatpush.bf16.msra.mxu0 %v1994
        %2057 = vmatpush.bf16.msra.mxu0 %v1992
        %2058 = vmatpush.bf16.msra.mxu0 %v1990
        %2059 = vmatpush.bf16.msra.mxu0 %v1988
        %2060 = vmatmul.bf16.gmra.mxu0 %v1796
        %v2061 = vpop.f32.mrf.mxu0
        %v2062 = vadd.f32 0.0, %v2061
        %v2063 = vpop.f32.mrf.mxu0
        %v2064 = vadd.f32 0.0, %v2063
        %2065 = vmatmul.bf16.gmra.mxu0 %v1798
        %v2066 = vpop.f32.mrf.mxu0
        %v2067 = vadd.f32 0.0, %v2066
        %v2068 = vpop.f32.mrf.mxu0
        %v2069 = vadd.f32 0.0, %v2068
        %2070 = vmatmul.bf16.gmra.mxu0 %v1800
        %v2071 = vpop.f32.mrf.mxu0
        %v2072 = vadd.f32 0.0, %v2071
        %v2073 = vpop.f32.mrf.mxu0
        %v2074 = vadd.f32 0.0, %v2073
        %2075 = vmatmul.bf16.gmra.mxu0 %v1802
        %v2076 = vpop.f32.mrf.mxu0
        %v2077 = vadd.f32 0.0, %v2076
        %v2078 = vpop.f32.mrf.mxu0
        %v2079 = vadd.f32 0.0, %v2078
        %2080 = vmatmul.bf16.gmra.mxu0 %v1804
        %v2081 = vpop.f32.mrf.mxu0
        %v2082 = vadd.f32 0.0, %v2081
        %v2083 = vpop.f32.mrf.mxu0
        %v2084 = vadd.f32 0.0, %v2083
        %2085 = vmatmul.bf16.gmra.mxu0 %v1806
        %v2086 = vpop.f32.mrf.mxu0
        %v2087 = vadd.f32 0.0, %v2086
        %v2088 = vpop.f32.mrf.mxu0
        %v2089 = vadd.f32 0.0, %v2088
        %2090 = vmatmul.bf16.gmra.mxu0 %v1808
        %v2091 = vpop.f32.mrf.mxu0
        %v2092 = vadd.f32 0.0, %v2091
        %v2093 = vpop.f32.mrf.mxu0
        %v2094 = vadd.f32 0.0, %v2093
        %2095 = vmatmul.bf16.gmra.mxu0 %v1810
        %v2096 = vpop.f32.mrf.mxu0
        %v2097 = vadd.f32 0.0, %v2096
        %v2098 = vpop.f32.mrf.mxu0
        %v2099 = vadd.f32 0.0, %v2098
        %2100 = vmatmul.bf16.gmra.mxu0 %v1812
        %v2101 = vpop.f32.mrf.mxu0
        %v2102 = vadd.f32 0.0, %v2101
        %v2103 = vpop.f32.mrf.mxu0
        %v2104 = vadd.f32 0.0, %v2103
        %2105 = vmatmul.bf16.gmra.mxu0 %v1814
        %v2106 = vpop.f32.mrf.mxu0
        %v2107 = vadd.f32 0.0, %v2106
        %v2108 = vpop.f32.mrf.mxu0
        %v2109 = vadd.f32 0.0, %v2108
        %2110 = vmatmul.bf16.gmra.mxu0 %v1816
        %v2111 = vpop.f32.mrf.mxu0
        %v2112 = vadd.f32 0.0, %v2111
        %v2113 = vpop.f32.mrf.mxu0
        %v2114 = vadd.f32 0.0, %v2113
        %2115 = vmatmul.bf16.gmra.mxu0 %v1818
        %v2116 = vpop.f32.mrf.mxu0
        %v2117 = vadd.f32 0.0, %v2116
        %v2118 = vpop.f32.mrf.mxu0
        %v2119 = vadd.f32 0.0, %v2118
        %2120 = vmatmul.bf16.gmra.mxu0 %v1820
        %v2121 = vpop.f32.mrf.mxu0
        %v2122 = vadd.f32 0.0, %v2121
        %v2123 = vpop.f32.mrf.mxu0
        %v2124 = vadd.f32 0.0, %v2123
        %2125 = vmatmul.bf16.gmra.mxu0 %v1822
        %v2126 = vpop.f32.mrf.mxu0
        %v2127 = vadd.f32 0.0, %v2126
        %v2128 = vpop.f32.mrf.mxu0
        %v2129 = vadd.f32 0.0, %v2128
        %2130 = vmatmul.bf16.gmra.mxu0 %v1824
        %v2131 = vpop.f32.mrf.mxu0
        %v2132 = vadd.f32 0.0, %v2131
        %v2133 = vpop.f32.mrf.mxu0
        %v2134 = vadd.f32 0.0, %v2133
        %2135 = vmatmul.bf16.gmra.mxu0 %v1826
        %v2136 = vpop.f32.mrf.mxu0
        %v2137 = vadd.f32 0.0, %v2136
        %v2138 = vpop.f32.mrf.mxu0
        %v2139 = vadd.f32 0.0, %v2138
        %2140 = vdwg.mxu0
        %2141 = vmatpush.bf16.msra.mxu0 %v2018
        %2142 = vmatpush.bf16.msra.mxu0 %v2016
        %2143 = vmatpush.bf16.msra.mxu0 %v2014
        %2144 = vmatpush.bf16.msra.mxu0 %v2012
        %2145 = vmatpush.bf16.msra.mxu0 %v2010
        %2146 = vmatpush.bf16.msra.mxu0 %v2008
        %2147 = vmatpush.bf16.msra.mxu0 %v2006
        %2148 = vmatpush.bf16.msra.mxu0 %v2004
        %2149 = vmatmul.bf16.gmra.mxu0 %v1797
        %v2150 = vpop.f32.mrf.mxu0
        %v2151 = vadd.f32 %v2062, %v2150
        %v2152 = vpop.f32.mrf.mxu0
        %v2153 = vadd.f32 %v2064, %v2152
        %2154 = vmatmul.bf16.gmra.mxu0 %v1799
        %v2155 = vpop.f32.mrf.mxu0
        %v2156 = vadd.f32 %v2067, %v2155
        %v2157 = vpop.f32.mrf.mxu0
        %v2158 = vadd.f32 %v2069, %v2157
        %2159 = vmatmul.bf16.gmra.mxu0 %v1801
        %v2160 = vpop.f32.mrf.mxu0
        %v2161 = vadd.f32 %v2072, %v2160
        %v2162 = vpop.f32.mrf.mxu0
        %v2163 = vadd.f32 %v2074, %v2162
        %2164 = vmatmul.bf16.gmra.mxu0 %v1803
        %v2165 = vpop.f32.mrf.mxu0
        %v2166 = vadd.f32 %v2077, %v2165
        %v2167 = vpop.f32.mrf.mxu0
        %v2168 = vadd.f32 %v2079, %v2167
        %2169 = vmatmul.bf16.gmra.mxu0 %v1805
        %v2170 = vpop.f32.mrf.mxu0
        %v2171 = vadd.f32 %v2082, %v2170
        %v2172 = vpop.f32.mrf.mxu0
        %v2173 = vadd.f32 %v2084, %v2172
        %2174 = vmatmul.bf16.gmra.mxu0 %v1807
        %v2175 = vpop.f32.mrf.mxu0
        %v2176 = vadd.f32 %v2087, %v2175
        %v2177 = vpop.f32.mrf.mxu0
        %v2178 = vadd.f32 %v2089, %v2177
        %2179 = vmatmul.bf16.gmra.mxu0 %v1809
        %v2180 = vpop.f32.mrf.mxu0
        %v2181 = vadd.f32 %v2092, %v2180
        %v2182 = vpop.f32.mrf.mxu0
        %v2183 = vadd.f32 %v2094, %v2182
        %2184 = vmatmul.bf16.gmra.mxu0 %v1811
        %v2185 = vpop.f32.mrf.mxu0
        %v2186 = vadd.f32 %v2097, %v2185
        %v2187 = vpop.f32.mrf.mxu0
        %v2188 = vadd.f32 %v2099, %v2187
        %2189 = vmatmul.bf16.gmra.mxu0 %v1813
        %v2190 = vpop.f32.mrf.mxu0
        %v2191 = vadd.f32 %v2102, %v2190
        %v2192 = vpop.f32.mrf.mxu0
        %v2193 = vadd.f32 %v2104, %v2192
        %2194 = vmatmul.bf16.gmra.mxu0 %v1815
        %v2195 = vpop.f32.mrf.mxu0
        %v2196 = vadd.f32 %v2107, %v2195
        %v2197 = vpop.f32.mrf.mxu0
        %v2198 = vadd.f32 %v2109, %v2197
        %2199 = vmatmul.bf16.gmra.mxu0 %v1817
        %v2200 = vpop.f32.mrf.mxu0
        %v2201 = vadd.f32 %v2112, %v2200
        %v2202 = vpop.f32.mrf.mxu0
        %v2203 = vadd.f32 %v2114, %v2202
        %2204 = vmatmul.bf16.gmra.mxu0 %v1819
        %v2205 = vpop.f32.mrf.mxu0
        %v2206 = vadd.f32 %v2117, %v2205
        %v2207 = vpop.f32.mrf.mxu0
        %v2208 = vadd.f32 %v2119, %v2207
        %2209 = vmatmul.bf16.gmra.mxu0 %v1821
        %v2210 = vpop.f32.mrf.mxu0
        %v2211 = vadd.f32 %v2122, %v2210
        %v2212 = vpop.f32.mrf.mxu0
        %v2213 = vadd.f32 %v2124, %v2212
        %2214 = vmatmul.bf16.gmra.mxu0 %v1823
        %v2215 = vpop.f32.mrf.mxu0
        %v2216 = vadd.f32 %v2127, %v2215
        %v2217 = vpop.f32.mrf.mxu0
        %v2218 = vadd.f32 %v2129, %v2217
        %2219 = vmatmul.bf16.gmra.mxu0 %v1825
        %v2220 = vpop.f32.mrf.mxu0
        %v2221 = vadd.f32 %v2132, %v2220
        %v2222 = vpop.f32.mrf.mxu0
        %v2223 = vadd.f32 %v2134, %v2222
        %2224 = vmatmul.bf16.gmra.mxu0 %v1827
        %v2225 = vpop.f32.mrf.mxu0
        %v2226 = vadd.f32 %v2137, %v2225
        %v2227 = vpop.f32.mrf.mxu0
        %v2228 = vadd.f32 %v2139, %v2227
        %2229 = vdwg.mxu0
        %2230 = vmatpush.bf16.msra.mxu0 %v2003
        %2231 = vmatpush.bf16.msra.mxu0 %v2001
        %2232 = vmatpush.bf16.msra.mxu0 %v1999
        %2233 = vmatpush.bf16.msra.mxu0 %v1997
        %2234 = vmatpush.bf16.msra.mxu0 %v1995
        %2235 = vmatpush.bf16.msra.mxu0 %v1993
        %2236 = vmatpush.bf16.msra.mxu0 %v1991
        %2237 = vmatpush.bf16.msra.mxu0 %v1989
        %2238 = vmatmul.bf16.gmra.mxu0 %v1796
        %v2239 = vpop.f32.mrf.mxu0
        %v2240 = vadd.f32 0.0, %v2239
        %v2241 = vpop.f32.mrf.mxu0
        %v2242 = vadd.f32 0.0, %v2241
        %2243 = vmatmul.bf16.gmra.mxu0 %v1798
        %v2244 = vpop.f32.mrf.mxu0
        %v2245 = vadd.f32 0.0, %v2244
        %v2246 = vpop.f32.mrf.mxu0
        %v2247 = vadd.f32 0.0, %v2246
        %2248 = vmatmul.bf16.gmra.mxu0 %v1800
        %v2249 = vpop.f32.mrf.mxu0
        %v2250 = vadd.f32 0.0, %v2249
        %v2251 = vpop.f32.mrf.mxu0
        %v2252 = vadd.f32 0.0, %v2251
        %2253 = vmatmul.bf16.gmra.mxu0 %v1802
        %v2254 = vpop.f32.mrf.mxu0
        %v2255 = vadd.f32 0.0, %v2254
        %v2256 = vpop.f32.mrf.mxu0
        %v2257 = vadd.f32 0.0, %v2256
        %2258 = vmatmul.bf16.gmra.mxu0 %v1804
        %v2259 = vpop.f32.mrf.mxu0
        %v2260 = vadd.f32 0.0, %v2259
        %v2261 = vpop.f32.mrf.mxu0
        %v2262 = vadd.f32 0.0, %v2261
        %2263 = vmatmul.bf16.gmra.mxu0 %v1806
        %v2264 = vpop.f32.mrf.mxu0
        %v2265 = vadd.f32 0.0, %v2264
        %v2266 = vpop.f32.mrf.mxu0
        %v2267 = vadd.f32 0.0, %v2266
        %2268 = vmatmul.bf16.gmra.mxu0 %v1808
        %v2269 = vpop.f32.mrf.mxu0
        %v2270 = vadd.f32 0.0, %v2269
        %v2271 = vpop.f32.mrf.mxu0
        %v2272 = vadd.f32 0.0, %v2271
        %2273 = vmatmul.bf16.gmra.mxu0 %v1810
        %v2274 = vpop.f32.mrf.mxu0
        %v2275 = vadd.f32 0.0, %v2274
        %v2276 = vpop.f32.mrf.mxu0
        %v2277 = vadd.f32 0.0, %v2276
        %2278 = vmatmul.bf16.gmra.mxu0 %v1812
        %v2279 = vpop.f32.mrf.mxu0
        %v2280 = vadd.f32 0.0, %v2279
        %v2281 = vpop.f32.mrf.mxu0
        %v2282 = vadd.f32 0.0, %v2281
        %2283 = vmatmul.bf16.gmra.mxu0 %v1814
        %v2284 = vpop.f32.mrf.mxu0
        %v2285 = vadd.f32 0.0, %v2284
        %v2286 = vpop.f32.mrf.mxu0
        %v2287 = vadd.f32 0.0, %v2286
        %2288 = vmatmul.bf16.gmra.mxu0 %v1816
        %v2289 = vpop.f32.mrf.mxu0
        %v2290 = vadd.f32 0.0, %v2289
        %v2291 = vpop.f32.mrf.mxu0
        %v2292 = vadd.f32 0.0, %v2291
        %2293 = vmatmul.bf16.gmra.mxu0 %v1818
        %v2294 = vpop.f32.mrf.mxu0
        %v2295 = vadd.f32 0.0, %v2294
        %v2296 = vpop.f32.mrf.mxu0
        %v2297 = vadd.f32 0.0, %v2296
        %2298 = vmatmul.bf16.gmra.mxu0 %v1820
        %v2299 = vpop.f32.mrf.mxu0
        %v2300 = vadd.f32 0.0, %v2299
        %v2301 = vpop.f32.mrf.mxu0
        %v2302 = vadd.f32 0.0, %v2301
        %2303 = vmatmul.bf16.gmra.mxu0 %v1822
        %v2304 = vpop.f32.mrf.mxu0
        %v2305 = vadd.f32 0.0, %v2304
        %v2306 = vpop.f32.mrf.mxu0
        %v2307 = vadd.f32 0.0, %v2306
        %2308 = vmatmul.bf16.gmra.mxu0 %v1824
        %v2309 = vpop.f32.mrf.mxu0
        %v2310 = vadd.f32 0.0, %v2309
        %v2311 = vpop.f32.mrf.mxu0
        %v2312 = vadd.f32 0.0, %v2311
        %2313 = vmatmul.bf16.gmra.mxu0 %v1826
        %v2314 = vpop.f32.mrf.mxu0
        %v2315 = vadd.f32 0.0, %v2314
        %v2316 = vpop.f32.mrf.mxu0
        %v2317 = vadd.f32 0.0, %v2316
        %2318 = vdwg.mxu0
        %2319 = vmatpush.bf16.msra.mxu0 %v2019
        %2320 = vmatpush.bf16.msra.mxu0 %v2017
        %2321 = vmatpush.bf16.msra.mxu0 %v2015
        %2322 = vmatpush.bf16.msra.mxu0 %v2013
        %2323 = vmatpush.bf16.msra.mxu0 %v2011
        %2324 = vmatpush.bf16.msra.mxu0 %v2009
        %2325 = vmatpush.bf16.msra.mxu0 %v2007
        %2326 = vmatpush.bf16.msra.mxu0 %v2005
        %2327 = vmatmul.bf16.gmra.mxu0 %v1797
        %v2328 = vpop.f32.mrf.mxu0
        %v2329 = vadd.f32 %v2240, %v2328
        %v2330 = vpop.f32.mrf.mxu0
        %v2331 = vadd.f32 %v2242, %v2330
        %2332 = vmatmul.bf16.gmra.mxu0 %v1799
        %v2333 = vpop.f32.mrf.mxu0
        %v2334 = vadd.f32 %v2245, %v2333
        %v2335 = vpop.f32.mrf.mxu0
        %v2336 = vadd.f32 %v2247, %v2335
        %2337 = vmatmul.bf16.gmra.mxu0 %v1801
        %v2338 = vpop.f32.mrf.mxu0
        %v2339 = vadd.f32 %v2250, %v2338
        %v2340 = vpop.f32.mrf.mxu0
        %v2341 = vadd.f32 %v2252, %v2340
        %2342 = vmatmul.bf16.gmra.mxu0 %v1803
        %v2343 = vpop.f32.mrf.mxu0
        %v2344 = vadd.f32 %v2255, %v2343
        %v2345 = vpop.f32.mrf.mxu0
        %v2346 = vadd.f32 %v2257, %v2345
        %2347 = vmatmul.bf16.gmra.mxu0 %v1805
        %v2348 = vpop.f32.mrf.mxu0
        %v2349 = vadd.f32 %v2260, %v2348
        %v2350 = vpop.f32.mrf.mxu0
        %v2351 = vadd.f32 %v2262, %v2350
        %2352 = vmatmul.bf16.gmra.mxu0 %v1807
        %v2353 = vpop.f32.mrf.mxu0
        %v2354 = vadd.f32 %v2265, %v2353
        %v2355 = vpop.f32.mrf.mxu0
        %v2356 = vadd.f32 %v2267, %v2355
        %2357 = vmatmul.bf16.gmra.mxu0 %v1809
        %v2358 = vpop.f32.mrf.mxu0
        %v2359 = vadd.f32 %v2270, %v2358
        %v2360 = vpop.f32.mrf.mxu0
        %v2361 = vadd.f32 %v2272, %v2360
        %2362 = vmatmul.bf16.gmra.mxu0 %v1811
        %v2363 = vpop.f32.mrf.mxu0
        %v2364 = vadd.f32 %v2275, %v2363
        %v2365 = vpop.f32.mrf.mxu0
        %v2366 = vadd.f32 %v2277, %v2365
        %2367 = vmatmul.bf16.gmra.mxu0 %v1813
        %v2368 = vpop.f32.mrf.mxu0
        %v2369 = vadd.f32 %v2280, %v2368
        %v2370 = vpop.f32.mrf.mxu0
        %v2371 = vadd.f32 %v2282, %v2370
        %2372 = vmatmul.bf16.gmra.mxu0 %v1815
        %v2373 = vpop.f32.mrf.mxu0
        %v2374 = vadd.f32 %v2285, %v2373
        %v2375 = vpop.f32.mrf.mxu0
        %v2376 = vadd.f32 %v2287, %v2375
        %2377 = vmatmul.bf16.gmra.mxu0 %v1817
        %v2378 = vpop.f32.mrf.mxu0
        %v2379 = vadd.f32 %v2290, %v2378
        %v2380 = vpop.f32.mrf.mxu0
        %v2381 = vadd.f32 %v2292, %v2380
        %2382 = vmatmul.bf16.gmra.mxu0 %v1819
        %v2383 = vpop.f32.mrf.mxu0
        %v2384 = vadd.f32 %v2295, %v2383
        %v2385 = vpop.f32.mrf.mxu0
        %v2386 = vadd.f32 %v2297, %v2385
        %2387 = vmatmul.bf16.gmra.mxu0 %v1821
        %v2388 = vpop.f32.mrf.mxu0
        %v2389 = vadd.f32 %v2300, %v2388
        %v2390 = vpop.f32.mrf.mxu0
        %v2391 = vadd.f32 %v2302, %v2390
        %2392 = vmatmul.bf16.gmra.mxu0 %v1823
        %v2393 = vpop.f32.mrf.mxu0
        %v2394 = vadd.f32 %v2305, %v2393
        %v2395 = vpop.f32.mrf.mxu0
        %v2396 = vadd.f32 %v2307, %v2395
        %2397 = vmatmul.bf16.gmra.mxu0 %v1825
        %v2398 = vpop.f32.mrf.mxu0
        %v2399 = vadd.f32 %v2310, %v2398
        %v2400 = vpop.f32.mrf.mxu0
        %v2401 = vadd.f32 %v2312, %v2400
        %2402 = vmatmul.bf16.gmra.mxu0 %v1827
        %v2403 = vpop.f32.mrf.mxu0
        %v2404 = vadd.f32 %v2315, %v2403
        %v2405 = vpop.f32.mrf.mxu0
        %v2406 = vadd.f32 %v2317, %v2405
        %2407 = vdwg.mxu0
        %v2408 = vadd.f32 %v1828, %v2151
        %v2409 = vadd.f32 %v1829, %v2329
        %v2410 = vadd.f32 %v1830, %v2153
        %v2411 = vadd.f32 %v1831, %v2331
        %v2412 = vadd.f32 %v1832, %v2156
        %v2413 = vadd.f32 %v1833, %v2334
        %v2414 = vadd.f32 %v1834, %v2158
        %v2415 = vadd.f32 %v1835, %v2336
        %v2416 = vadd.f32 %v1836, %v2161
        %v2417 = vadd.f32 %v1837, %v2339
        %v2418 = vadd.f32 %v1838, %v2163
        %v2419 = vadd.f32 %v1839, %v2341
        %v2420 = vadd.f32 %v1840, %v2166
        %v2421 = vadd.f32 %v1841, %v2344
        %v2422 = vadd.f32 %v1842, %v2168
        %v2423 = vadd.f32 %v1843, %v2346
        %v2424 = vadd.f32 %v1844, %v2171
        %v2425 = vadd.f32 %v1845, %v2349
        %v2426 = vadd.f32 %v1846, %v2173
        %v2427 = vadd.f32 %v1847, %v2351
        %v2428 = vadd.f32 %v1848, %v2176
        %v2429 = vadd.f32 %v1849, %v2354
        %v2430 = vadd.f32 %v1850, %v2178
        %v2431 = vadd.f32 %v1851, %v2356
        %v2432 = vadd.f32 %v1852, %v2181
        %v2433 = vadd.f32 %v1853, %v2359
        %v2434 = vadd.f32 %v1854, %v2183
        %v2435 = vadd.f32 %v1855, %v2361
        %v2436 = vadd.f32 %v1856, %v2186
        %v2437 = vadd.f32 %v1857, %v2364
        %v2438 = vadd.f32 %v1858, %v2188
        %v2439 = vadd.f32 %v1859, %v2366
        %v2440 = vadd.f32 %v1860, %v2191
        %v2441 = vadd.f32 %v1861, %v2369
        %v2442 = vadd.f32 %v1862, %v2193
        %v2443 = vadd.f32 %v1863, %v2371
        %v2444 = vadd.f32 %v1864, %v2196
        %v2445 = vadd.f32 %v1865, %v2374
        %v2446 = vadd.f32 %v1866, %v2198
        %v2447 = vadd.f32 %v1867, %v2376
        %v2448 = vadd.f32 %v1868, %v2201
        %v2449 = vadd.f32 %v1869, %v2379
        %v2450 = vadd.f32 %v1870, %v2203
        %v2451 = vadd.f32 %v1871, %v2381
        %v2452 = vadd.f32 %v1872, %v2206
        %v2453 = vadd.f32 %v1873, %v2384
        %v2454 = vadd.f32 %v1874, %v2208
        %v2455 = vadd.f32 %v1875, %v2386
        %v2456 = vadd.f32 %v1876, %v2211
        %v2457 = vadd.f32 %v1877, %v2389
        %v2458 = vadd.f32 %v1878, %v2213
        %v2459 = vadd.f32 %v1879, %v2391
        %v2460 = vadd.f32 %v1880, %v2216
        %v2461 = vadd.f32 %v1881, %v2394
        %v2462 = vadd.f32 %v1882, %v2218
        %v2463 = vadd.f32 %v1883, %v2396
        %v2464 = vadd.f32 %v1884, %v2221
        %v2465 = vadd.f32 %v1885, %v2399
        %v2466 = vadd.f32 %v1886, %v2223
        %v2467 = vadd.f32 %v1887, %v2401
        %v2468 = vadd.f32 %v1888, %v2226
        %v2469 = vadd.f32 %v1889, %v2404
        %v2470 = vadd.f32 %v1890, %v2228
        %v2471 = vadd.f32 %v1891, %v2406
        %2472 = vst [vmem:[#allocation2] sm:$0xff] %v2408
        %2473 = vst [vmem:[#allocation2 + $0x8] sm:$0xff] %v2409
        %2474 = vst [vmem:[#allocation2 + $0x10] sm:$0xff] %v2410
        %2475 = vst [vmem:[#allocation2 + $0x18] sm:$0xff] %v2411
        %2476 = vst [vmem:[#allocation2 + $0x20] sm:$0xff] %v2412
        %2477 = vst [vmem:[#allocation2 + $0x28] sm:$0xff] %v2413
        %2478 = vst [vmem:[#allocation2 + $0x30] sm:$0xff] %v2414
        %2479 = vst [vmem:[#allocation2 + $0x38] sm:$0xff] %v2415
        %2480 = vst [vmem:[#allocation2 + $0x40] sm:$0xff] %v2416
        %2481 = vst [vmem:[#allocation2 + $0x48] sm:$0xff] %v2417
        %2482 = vst [vmem:[#allocation2 + $0x50] sm:$0xff] %v2418
        %2483 = vst [vmem:[#allocation2 + $0x58] sm:$0xff] %v2419
        %2484 = vst [vmem:[#allocation2 + $0x60] sm:$0xff] %v2420
        %2485 = vst [vmem:[#allocation2 + $0x68] sm:$0xff] %v2421
        %2486 = vst [vmem:[#allocation2 + $0x70] sm:$0xff] %v2422
        %2487 = vst [vmem:[#allocation2 + $0x78] sm:$0xff] %v2423
        %2488 = vst [vmem:[#allocation2 + $0x80] sm:$0xff] %v2424
        %2489 = vst [vmem:[#allocation2 + $0x88] sm:$0xff] %v2425
        %2490 = vst [vmem:[#allocation2 + $0x90] sm:$0xff] %v2426
        %2491 = vst [vmem:[#allocation2 + $0x98] sm:$0xff] %v2427
        %2492 = vst [vmem:[#allocation2 + $0xa0] sm:$0xff] %v2428
        %2493 = vst [vmem:[#allocation2 + $0xa8] sm:$0xff] %v2429
        %2494 = vst [vmem:[#allocation2 + $0xb0] sm:$0xff] %v2430
        %2495 = vst [vmem:[#allocation2 + $0xb8] sm:$0xff] %v2431
        %2496 = vst [vmem:[#allocation2 + $0xc0] sm:$0xff] %v2432
        %2497 = vst [vmem:[#allocation2 + $0xc8] sm:$0xff] %v2433
        %2498 = vst [vmem:[#allocation2 + $0xd0] sm:$0xff] %v2434
        %2499 = vst [vmem:[#allocation2 + $0xd8] sm:$0xff] %v2435
        %2500 = vst [vmem:[#allocation2 + $0xe0] sm:$0xff] %v2436
        %2501 = vst [vmem:[#allocation2 + $0xe8] sm:$0xff] %v2437
        %2502 = vst [vmem:[#allocation2 + $0xf0] sm:$0xff] %v2438
        %2503 = vst [vmem:[#allocation2 + $0xf8] sm:$0xff] %v2439
        %2504 = vst [vmem:[#allocation2 + $0x100] sm:$0xff] %v2440
        %2505 = vst [vmem:[#allocation2 + $0x108] sm:$0xff] %v2441
        %2506 = vst [vmem:[#allocation2 + $0x110] sm:$0xff] %v2442
        %2507 = vst [vmem:[#allocation2 + $0x118] sm:$0xff] %v2443
        %2508 = vst [vmem:[#allocation2 + $0x120] sm:$0xff] %v2444
        %2509 = vst [vmem:[#allocation2 + $0x128] sm:$0xff] %v2445
        %2510 = vst [vmem:[#allocation2 + $0x130] sm:$0xff] %v2446
        %2511 = vst [vmem:[#allocation2 + $0x138] sm:$0xff] %v2447
        %2512 = vst [vmem:[#allocation2 + $0x140] sm:$0xff] %v2448
        %2513 = vst [vmem:[#allocation2 + $0x148] sm:$0xff] %v2449
        %2514 = vst [vmem:[#allocation2 + $0x150] sm:$0xff] %v2450
        %2515 = vst [vmem:[#allocation2 + $0x158] sm:$0xff] %v2451
        %2516 = vst [vmem:[#allocation2 + $0x160] sm:$0xff] %v2452
        %2517 = vst [vmem:[#allocation2 + $0x168] sm:$0xff] %v2453
        %2518 = vst [vmem:[#allocation2 + $0x170] sm:$0xff] %v2454
        %2519 = vst [vmem:[#allocation2 + $0x178] sm:$0xff] %v2455
        %2520 = vst [vmem:[#allocation2 + $0x180] sm:$0xff] %v2456
        %2521 = vst [vmem:[#allocation2 + $0x188] sm:$0xff] %v2457
        %2522 = vst [vmem:[#allocation2 + $0x190] sm:$0xff] %v2458
        %2523 = vst [vmem:[#allocation2 + $0x198] sm:$0xff] %v2459
        %2524 = vst [vmem:[#allocation2 + $0x1a0] sm:$0xff] %v2460
        %2525 = vst [vmem:[#allocation2 + $0x1a8] sm:$0xff] %v2461
        %2526 = vst [vmem:[#allocation2 + $0x1b0] sm:$0xff] %v2462
        %2527 = vst [vmem:[#allocation2 + $0x1b8] sm:$0xff] %v2463
        %2528 = vst [vmem:[#allocation2 + $0x1c0] sm:$0xff] %v2464
        %2529 = vst [vmem:[#allocation2 + $0x1c8] sm:$0xff] %v2465
        %2530 = vst [vmem:[#allocation2 + $0x1d0] sm:$0xff] %v2466
        %2531 = vst [vmem:[#allocation2 + $0x1d8] sm:$0xff] %v2467
        %2532 = vst [vmem:[#allocation2 + $0x1e0] sm:$0xff] %v2468
        %2533 = vst [vmem:[#allocation2 + $0x1e8] sm:$0xff] %v2469
        %2534 = vst [vmem:[#allocation2 + $0x1f0] sm:$0xff] %v2470
        %2535 = vst [vmem:[#allocation2 + $0x1f8] sm:$0xff] %v2471
        // Predicated region
        $region45: #{moe_mlp_forward.1} parent=39 // pred_check
          %p2536 = pneg %p380
        $region46: #{moe_mlp_forward.1} parent=39 // pred_check_branch
          %2538 = sbr.rel (%p2536) target = $region48
        $region47: #{moe_mlp_forward.1} parent=39 // pred_region
          %v2539 = vld [vmem:[%s332] sm:$0xff]
          %v2540 = vld [vmem:[%s332 + $0x8] sm:$0xff]
          %v2541 = vld [vmem:[%s332 + $0x10] sm:$0xff]
          %v2542 = vld [vmem:[%s332 + $0x18] sm:$0xff]
          %v2543 = vld [vmem:[%s332 + $0x20] sm:$0xff]
          %v2544 = vld [vmem:[%s332 + $0x28] sm:$0xff]
          %v2545 = vld [vmem:[%s332 + $0x30] sm:$0xff]
          %v2546 = vld [vmem:[%s332 + $0x38] sm:$0xff]
          %v2547 = vld [vmem:[%s332 + $0x40] sm:$0xff]
          %v2548 = vld [vmem:[%s332 + $0x48] sm:$0xff]
          %v2549 = vld [vmem:[%s332 + $0x50] sm:$0xff]
          %v2550 = vld [vmem:[%s332 + $0x58] sm:$0xff]
          %v2551 = vld [vmem:[%s332 + $0x60] sm:$0xff]
          %v2552 = vld [vmem:[%s332 + $0x68] sm:$0xff]
          %v2553 = vld [vmem:[%s332 + $0x70] sm:$0xff]
          %v2554 = vld [vmem:[%s332 + $0x78] sm:$0xff]
          %v2555 = vld [vmem:[%s332 + $0x80] sm:$0xff]
          %v2556 = vld [vmem:[%s332 + $0x88] sm:$0xff]
          %v2557 = vld [vmem:[%s332 + $0x90] sm:$0xff]
          %v2558 = vld [vmem:[%s332 + $0x98] sm:$0xff]
          %v2559 = vld [vmem:[%s332 + $0xa0] sm:$0xff]
          %v2560 = vld [vmem:[%s332 + $0xa8] sm:$0xff]
          %v2561 = vld [vmem:[%s332 + $0xb0] sm:$0xff]
          %v2562 = vld [vmem:[%s332 + $0xb8] sm:$0xff]
          %v2563 = vld [vmem:[%s332 + $0xc0] sm:$0xff]
          %v2564 = vld [vmem:[%s332 + $0xc8] sm:$0xff]
          %v2565 = vld [vmem:[%s332 + $0xd0] sm:$0xff]
          %v2566 = vld [vmem:[%s332 + $0xd8] sm:$0xff]
          %v2567 = vld [vmem:[%s332 + $0xe0] sm:$0xff]
          %v2568 = vld [vmem:[%s332 + $0xe8] sm:$0xff]
          %v2569 = vld [vmem:[%s332 + $0xf0] sm:$0xff]
          %v2570 = vld [vmem:[%s332 + $0xf8] sm:$0xff]
          %v2571 = vld [vmem:[#allocation2] sm:$0xff]
          %v2572 = vld [vmem:[#allocation2 + $0x8] sm:$0xff]
          %v2573 = vld [vmem:[#allocation2 + $0x10] sm:$0xff]
          %v2574 = vld [vmem:[#allocation2 + $0x18] sm:$0xff]
          %v2575 = vld [vmem:[#allocation2 + $0x20] sm:$0xff]
          %v2576 = vld [vmem:[#allocation2 + $0x28] sm:$0xff]
          %v2577 = vld [vmem:[#allocation2 + $0x30] sm:$0xff]
          %v2578 = vld [vmem:[#allocation2 + $0x38] sm:$0xff]
          %v2579 = vld [vmem:[#allocation2 + $0x40] sm:$0xff]
          %v2580 = vld [vmem:[#allocation2 + $0x48] sm:$0xff]
          %v2581 = vld [vmem:[#allocation2 + $0x50] sm:$0xff]
          %v2582 = vld [vmem:[#allocation2 + $0x58] sm:$0xff]
          %v2583 = vld [vmem:[#allocation2 + $0x60] sm:$0xff]
          %v2584 = vld [vmem:[#allocation2 + $0x68] sm:$0xff]
          %v2585 = vld [vmem:[#allocation2 + $0x70] sm:$0xff]
          %v2586 = vld [vmem:[#allocation2 + $0x78] sm:$0xff]
          %v2587 = vld [vmem:[#allocation2 + $0x80] sm:$0xff]
          %v2588 = vld [vmem:[#allocation2 + $0x88] sm:$0xff]
          %v2589 = vld [vmem:[#allocation2 + $0x90] sm:$0xff]
          %v2590 = vld [vmem:[#allocation2 + $0x98] sm:$0xff]
          %v2591 = vld [vmem:[#allocation2 + $0xa0] sm:$0xff]
          %v2592 = vld [vmem:[#allocation2 + $0xa8] sm:$0xff]
          %v2593 = vld [vmem:[#allocation2 + $0xb0] sm:$0xff]
          %v2594 = vld [vmem:[#allocation2 + $0xb8] sm:$0xff]
          %v2595 = vld [vmem:[#allocation2 + $0xc0] sm:$0xff]
          %v2596 = vld [vmem:[#allocation2 + $0xc8] sm:$0xff]
          %v2597 = vld [vmem:[#allocation2 + $0xd0] sm:$0xff]
          %v2598 = vld [vmem:[#allocation2 + $0xd8] sm:$0xff]
          %v2599 = vld [vmem:[#allocation2 + $0xe0] sm:$0xff]
          %v2600 = vld [vmem:[#allocation2 + $0xe8] sm:$0xff]
          %v2601 = vld [vmem:[#allocation2 + $0xf0] sm:$0xff]
          %v2602 = vld [vmem:[#allocation2 + $0xf8] sm:$0xff]
          %v2603 = vld [vmem:[#allocation2 + $0x100] sm:$0xff]
          %v2604 = vld [vmem:[#allocation2 + $0x108] sm:$0xff]
          %v2605 = vld [vmem:[#allocation2 + $0x110] sm:$0xff]
          %v2606 = vld [vmem:[#allocation2 + $0x118] sm:$0xff]
          %v2607 = vld [vmem:[#allocation2 + $0x120] sm:$0xff]
          %v2608 = vld [vmem:[#allocation2 + $0x128] sm:$0xff]
          %v2609 = vld [vmem:[#allocation2 + $0x130] sm:$0xff]
          %v2610 = vld [vmem:[#allocation2 + $0x138] sm:$0xff]
          %v2611 = vld [vmem:[#allocation2 + $0x140] sm:$0xff]
          %v2612 = vld [vmem:[#allocation2 + $0x148] sm:$0xff]
          %v2613 = vld [vmem:[#allocation2 + $0x150] sm:$0xff]
          %v2614 = vld [vmem:[#allocation2 + $0x158] sm:$0xff]
          %v2615 = vld [vmem:[#allocation2 + $0x160] sm:$0xff]
          %v2616 = vld [vmem:[#allocation2 + $0x168] sm:$0xff]
          %v2617 = vld [vmem:[#allocation2 + $0x170] sm:$0xff]
          %v2618 = vld [vmem:[#allocation2 + $0x178] sm:$0xff]
          %v2619 = vld [vmem:[#allocation2 + $0x180] sm:$0xff]
          %v2620 = vld [vmem:[#allocation2 + $0x188] sm:$0xff]
          %v2621 = vld [vmem:[#allocation2 + $0x190] sm:$0xff]
          %v2622 = vld [vmem:[#allocation2 + $0x198] sm:$0xff]
          %v2623 = vld [vmem:[#allocation2 + $0x1a0] sm:$0xff]
          %v2624 = vld [vmem:[#allocation2 + $0x1a8] sm:$0xff]
          %v2625 = vld [vmem:[#allocation2 + $0x1b0] sm:$0xff]
          %v2626 = vld [vmem:[#allocation2 + $0x1b8] sm:$0xff]
          %v2627 = vld [vmem:[#allocation2 + $0x1c0] sm:$0xff]
          %v2628 = vld [vmem:[#allocation2 + $0x1c8] sm:$0xff]
          %v2629 = vld [vmem:[#allocation2 + $0x1d0] sm:$0xff]
          %v2630 = vld [vmem:[#allocation2 + $0x1d8] sm:$0xff]
          %v2631 = vld [vmem:[#allocation2 + $0x1e0] sm:$0xff]
          %v2632 = vld [vmem:[#allocation2 + $0x1e8] sm:$0xff]
          %v2633 = vld [vmem:[#allocation2 + $0x1f0] sm:$0xff]
          %v2634 = vld [vmem:[#allocation2 + $0x1f8] sm:$0xff]
          %2636 = vset.pattern.permute.xlu0 0
          %2637 = vperm.xlu0 %2636, %v2539
          %v2638 = vpop.permute.xlu0 %2637
          %2641 = vset.pattern.permute.xlu0 0
          %2642 = vperm.xlu0 %2641, %v2540
          %v2643 = vpop.permute.xlu0 %2642
          %2646 = vset.pattern.permute.xlu0 0
          %2647 = vperm.xlu0 %2646, %v2541
          %v2648 = vpop.permute.xlu0 %2647
          %2651 = vset.pattern.permute.xlu0 0
          %2652 = vperm.xlu0 %2651, %v2542
          %v2653 = vpop.permute.xlu0 %2652
          %2656 = vset.pattern.permute.xlu0 0
          %2657 = vperm.xlu0 %2656, %v2543
          %v2658 = vpop.permute.xlu0 %2657
          %2661 = vset.pattern.permute.xlu0 0
          %2662 = vperm.xlu0 %2661, %v2544
          %v2663 = vpop.permute.xlu0 %2662
          %2666 = vset.pattern.permute.xlu0 0
          %2667 = vperm.xlu0 %2666, %v2545
          %v2668 = vpop.permute.xlu0 %2667
          %2671 = vset.pattern.permute.xlu0 0
          %2672 = vperm.xlu0 %2671, %v2546
          %v2673 = vpop.permute.xlu0 %2672
          %2676 = vset.pattern.permute.xlu0 0
          %2677 = vperm.xlu0 %2676, %v2547
          %v2678 = vpop.permute.xlu0 %2677
          %2681 = vset.pattern.permute.xlu0 0
          %2682 = vperm.xlu0 %2681, %v2548
          %v2683 = vpop.permute.xlu0 %2682
          %2686 = vset.pattern.permute.xlu0 0
          %2687 = vperm.xlu0 %2686, %v2549
          %v2688 = vpop.permute.xlu0 %2687
          %2691 = vset.pattern.permute.xlu0 0
          %2692 = vperm.xlu0 %2691, %v2550
          %v2693 = vpop.permute.xlu0 %2692
          %2696 = vset.pattern.permute.xlu0 0
          %2697 = vperm.xlu0 %2696, %v2551
          %v2698 = vpop.permute.xlu0 %2697
          %2701 = vset.pattern.permute.xlu0 0
          %2702 = vperm.xlu0 %2701, %v2552
          %v2703 = vpop.permute.xlu0 %2702
          %2706 = vset.pattern.permute.xlu0 0
          %2707 = vperm.xlu0 %2706, %v2553
          %v2708 = vpop.permute.xlu0 %2707
          %2711 = vset.pattern.permute.xlu0 0
          %2712 = vperm.xlu0 %2711, %v2554
          %v2713 = vpop.permute.xlu0 %2712
          %2716 = vset.pattern.permute.xlu0 0
          %2717 = vperm.xlu0 %2716, %v2555
          %v2718 = vpop.permute.xlu0 %2717
          %2721 = vset.pattern.permute.xlu0 0
          %2722 = vperm.xlu0 %2721, %v2556
          %v2723 = vpop.permute.xlu0 %2722
          %2726 = vset.pattern.permute.xlu0 0
          %2727 = vperm.xlu0 %2726, %v2557
          %v2728 = vpop.permute.xlu0 %2727
          %2731 = vset.pattern.permute.xlu0 0
          %2732 = vperm.xlu0 %2731, %v2558
          %v2733 = vpop.permute.xlu0 %2732
          %2736 = vset.pattern.permute.xlu0 0
          %2737 = vperm.xlu0 %2736, %v2559
          %v2738 = vpop.permute.xlu0 %2737
          %2741 = vset.pattern.permute.xlu0 0
          %2742 = vperm.xlu0 %2741, %v2560
          %v2743 = vpop.permute.xlu0 %2742
          %2746 = vset.pattern.permute.xlu0 0
          %2747 = vperm.xlu0 %2746, %v2561
          %v2748 = vpop.permute.xlu0 %2747
          %2751 = vset.pattern.permute.xlu0 0
          %2752 = vperm.xlu0 %2751, %v2562
          %v2753 = vpop.permute.xlu0 %2752
          %2756 = vset.pattern.permute.xlu0 0
          %2757 = vperm.xlu0 %2756, %v2563
          %v2758 = vpop.permute.xlu0 %2757
          %2761 = vset.pattern.permute.xlu0 0
          %2762 = vperm.xlu0 %2761, %v2564
          %v2763 = vpop.permute.xlu0 %2762
          %2766 = vset.pattern.permute.xlu0 0
          %2767 = vperm.xlu0 %2766, %v2565
          %v2768 = vpop.permute.xlu0 %2767
          %2771 = vset.pattern.permute.xlu0 0
          %2772 = vperm.xlu0 %2771, %v2566
          %v2773 = vpop.permute.xlu0 %2772
          %2776 = vset.pattern.permute.xlu0 0
          %2777 = vperm.xlu0 %2776, %v2567
          %v2778 = vpop.permute.xlu0 %2777
          %2781 = vset.pattern.permute.xlu0 0
          %2782 = vperm.xlu0 %2781, %v2568
          %v2783 = vpop.permute.xlu0 %2782
          %2786 = vset.pattern.permute.xlu0 0
          %2787 = vperm.xlu0 %2786, %v2569
          %v2788 = vpop.permute.xlu0 %2787
          %2791 = vset.pattern.permute.xlu0 0
          %2792 = vperm.xlu0 %2791, %v2570
          %v2793 = vpop.permute.xlu0 %2792
          %v2795 = vmul.f32 %v2638, %v2571
          %v2796 = vmul.f32 %v2638, %v2572
          %v2797 = vmul.f32 %v2643, %v2573
          %v2798 = vmul.f32 %v2643, %v2574
          %v2799 = vmul.f32 %v2648, %v2575
          %v2800 = vmul.f32 %v2648, %v2576
          %v2801 = vmul.f32 %v2653, %v2577
          %v2802 = vmul.f32 %v2653, %v2578
          %v2803 = vmul.f32 %v2658, %v2579
          %v2804 = vmul.f32 %v2658, %v2580
          %v2805 = vmul.f32 %v2663, %v2581
          %v2806 = vmul.f32 %v2663, %v2582
          %v2807 = vmul.f32 %v2668, %v2583
          %v2808 = vmul.f32 %v2668, %v2584
          %v2809 = vmul.f32 %v2673, %v2585
          %v2810 = vmul.f32 %v2673, %v2586
          %v2811 = vmul.f32 %v2678, %v2587
          %v2812 = vmul.f32 %v2678, %v2588
          %v2813 = vmul.f32 %v2683, %v2589
          %v2814 = vmul.f32 %v2683, %v2590
          %v2815 = vmul.f32 %v2688, %v2591
          %v2816 = vmul.f32 %v2688, %v2592
          %v2817 = vmul.f32 %v2693, %v2593
          %v2818 = vmul.f32 %v2693, %v2594
          %v2819 = vmul.f32 %v2698, %v2595
          %v2820 = vmul.f32 %v2698, %v2596
          %v2821 = vmul.f32 %v2703, %v2597
          %v2822 = vmul.f32 %v2703, %v2598
          %v2823 = vmul.f32 %v2708, %v2599
          %v2824 = vmul.f32 %v2708, %v2600
          %v2825 = vmul.f32 %v2713, %v2601
          %v2826 = vmul.f32 %v2713, %v2602
          %v2827 = vmul.f32 %v2718, %v2603
          %v2828 = vmul.f32 %v2718, %v2604
          %v2829 = vmul.f32 %v2723, %v2605
          %v2830 = vmul.f32 %v2723, %v2606
          %v2831 = vmul.f32 %v2728, %v2607
          %v2832 = vmul.f32 %v2728, %v2608
          %v2833 = vmul.f32 %v2733, %v2609
          %v2834 = vmul.f32 %v2733, %v2610
          %v2835 = vmul.f32 %v2738, %v2611
          %v2836 = vmul.f32 %v2738, %v2612
          %v2837 = vmul.f32 %v2743, %v2613
          %v2838 = vmul.f32 %v2743, %v2614
          %v2839 = vmul.f32 %v2748, %v2615
          %v2840 = vmul.f32 %v2748, %v2616
          %v2841 = vmul.f32 %v2753, %v2617
          %v2842 = vmul.f32 %v2753, %v2618
          %v2843 = vmul.f32 %v2758, %v2619
          %v2844 = vmul.f32 %v2758, %v2620
          %v2845 = vmul.f32 %v2763, %v2621
          %v2846 = vmul.f32 %v2763, %v2622
          %v2847 = vmul.f32 %v2768, %v2623
          %v2848 = vmul.f32 %v2768, %v2624
          %v2849 = vmul.f32 %v2773, %v2625
          %v2850 = vmul.f32 %v2773, %v2626
          %v2851 = vmul.f32 %v2778, %v2627
          %v2852 = vmul.f32 %v2778, %v2628
          %v2853 = vmul.f32 %v2783, %v2629
          %v2854 = vmul.f32 %v2783, %v2630
          %v2855 = vmul.f32 %v2788, %v2631
          %v2856 = vmul.f32 %v2788, %v2632
          %v2857 = vmul.f32 %v2793, %v2633
          %v2858 = vmul.f32 %v2793, %v2634
          %v2859 = vpack.c.bf16 %v2796, %v2795
          %v2860 = vpack.c.bf16 %v2798, %v2797
          %v2861 = vpack.c.bf16 %v2800, %v2799
          %v2862 = vpack.c.bf16 %v2802, %v2801
          %v2863 = vpack.c.bf16 %v2804, %v2803
          %v2864 = vpack.c.bf16 %v2806, %v2805
          %v2865 = vpack.c.bf16 %v2808, %v2807
          %v2866 = vpack.c.bf16 %v2810, %v2809
          %v2867 = vpack.c.bf16 %v2812, %v2811
          %v2868 = vpack.c.bf16 %v2814, %v2813
          %v2869 = vpack.c.bf16 %v2816, %v2815
          %v2870 = vpack.c.bf16 %v2818, %v2817
          %v2871 = vpack.c.bf16 %v2820, %v2819
          %v2872 = vpack.c.bf16 %v2822, %v2821
          %v2873 = vpack.c.bf16 %v2824, %v2823
          %v2874 = vpack.c.bf16 %v2826, %v2825
          %v2875 = vpack.c.bf16 %v2828, %v2827
          %v2876 = vpack.c.bf16 %v2830, %v2829
          %v2877 = vpack.c.bf16 %v2832, %v2831
          %v2878 = vpack.c.bf16 %v2834, %v2833
          %v2879 = vpack.c.bf16 %v2836, %v2835
          %v2880 = vpack.c.bf16 %v2838, %v2837
          %v2881 = vpack.c.bf16 %v2840, %v2839
          %v2882 = vpack.c.bf16 %v2842, %v2841
          %v2883 = vpack.c.bf16 %v2844, %v2843
          %v2884 = vpack.c.bf16 %v2846, %v2845
          %v2885 = vpack.c.bf16 %v2848, %v2847
          %v2886 = vpack.c.bf16 %v2850, %v2849
          %v2887 = vpack.c.bf16 %v2852, %v2851
          %v2888 = vpack.c.bf16 %v2854, %v2853
          %v2889 = vpack.c.bf16 %v2856, %v2855
          %v2890 = vpack.c.bf16 %v2858, %v2857
          %2891 = vst [vmem:[%s372] sm:$0xff] %v2859
          %2892 = vst [vmem:[%s372 + $0x8] sm:$0xff] %v2860
          %2893 = vst [vmem:[%s372 + $0x10] sm:$0xff] %v2861
          %2894 = vst [vmem:[%s372 + $0x18] sm:$0xff] %v2862
          %2895 = vst [vmem:[%s372 + $0x20] sm:$0xff] %v2863
          %2896 = vst [vmem:[%s372 + $0x28] sm:$0xff] %v2864
          %2897 = vst [vmem:[%s372 + $0x30] sm:$0xff] %v2865
          %2898 = vst [vmem:[%s372 + $0x38] sm:$0xff] %v2866
          %2899 = vst [vmem:[%s372 + $0x40] sm:$0xff] %v2867
          %2900 = vst [vmem:[%s372 + $0x48] sm:$0xff] %v2868
          %2901 = vst [vmem:[%s372 + $0x50] sm:$0xff] %v2869
          %2902 = vst [vmem:[%s372 + $0x58] sm:$0xff] %v2870
          %2903 = vst [vmem:[%s372 + $0x60] sm:$0xff] %v2871
          %2904 = vst [vmem:[%s372 + $0x68] sm:$0xff] %v2872
          %2905 = vst [vmem:[%s372 + $0x70] sm:$0xff] %v2873
          %2906 = vst [vmem:[%s372 + $0x78] sm:$0xff] %v2874
          %2907 = vst [vmem:[%s372 + $0x80] sm:$0xff] %v2875
          %2908 = vst [vmem:[%s372 + $0x88] sm:$0xff] %v2876
          %2909 = vst [vmem:[%s372 + $0x90] sm:$0xff] %v2877
          %2910 = vst [vmem:[%s372 + $0x98] sm:$0xff] %v2878
          %2911 = vst [vmem:[%s372 + $0xa0] sm:$0xff] %v2879
          %2912 = vst [vmem:[%s372 + $0xa8] sm:$0xff] %v2880
          %2913 = vst [vmem:[%s372 + $0xb0] sm:$0xff] %v2881
          %2914 = vst [vmem:[%s372 + $0xb8] sm:$0xff] %v2882
          %2915 = vst [vmem:[%s372 + $0xc0] sm:$0xff] %v2883
          %2916 = vst [vmem:[%s372 + $0xc8] sm:$0xff] %v2884
          %2917 = vst [vmem:[%s372 + $0xd0] sm:$0xff] %v2885
          %2918 = vst [vmem:[%s372 + $0xd8] sm:$0xff] %v2886
          %2919 = vst [vmem:[%s372 + $0xe0] sm:$0xff] %v2887
          %2920 = vst [vmem:[%s372 + $0xe8] sm:$0xff] %v2888
          %2921 = vst [vmem:[%s372 + $0xf0] sm:$0xff] %v2889
          %2922 = vst [vmem:[%s372 + $0xf8] sm:$0xff] %v2890
        $region48: #{moe_mlp_forward.1} parent=39 // pred_fallthru
          _
      $region40: #{moe_mlp_forward.1} parent=35 // pred_fallthru
        _
      %p2923 = scmp.ge.s32.totalorder %s36, %s375
      %p2924 = scmp.eq.s32.totalorder %s37, 0
      %p2925 = pnand %p2923, %p2924
      %p2926 = pneg %p2925
      // Predicated region
      $region49: #{moe_mlp_forward.1} parent=35 // pred_check
        _
      $region50: #{moe_mlp_forward.1} parent=35 // pred_check_branch
        %2928 = sbr.rel (%p2925) target = $region52
      $region51: #{moe_mlp_forward.1} parent=35 // pred_region
        %2929 = vst [vmem:[%s372] sm:$0xff] 0
        %2930 = vst [vmem:[%s372 + $0x8] sm:$0xff] 0
        %2931 = vst [vmem:[%s372 + $0x10] sm:$0xff] 0
        %2932 = vst [vmem:[%s372 + $0x18] sm:$0xff] 0
        %2933 = vst [vmem:[%s372 + $0x20] sm:$0xff] 0
        %2934 = vst [vmem:[%s372 + $0x28] sm:$0xff] 0
        %2935 = vst [vmem:[%s372 + $0x30] sm:$0xff] 0
        %2936 = vst [vmem:[%s372 + $0x38] sm:$0xff] 0
        %2937 = vst [vmem:[%s372 + $0x40] sm:$0xff] 0
        %2938 = vst [vmem:[%s372 + $0x48] sm:$0xff] 0
        %2939 = vst [vmem:[%s372 + $0x50] sm:$0xff] 0
        %2940 = vst [vmem:[%s372 + $0x58] sm:$0xff] 0
        %2941 = vst [vmem:[%s372 + $0x60] sm:$0xff] 0
        %2942 = vst [vmem:[%s372 + $0x68] sm:$0xff] 0
        %2943 = vst [vmem:[%s372 + $0x70] sm:$0xff] 0
        %2944 = vst [vmem:[%s372 + $0x78] sm:$0xff] 0
        %2945 = vst [vmem:[%s372 + $0x80] sm:$0xff] 0
        %2946 = vst [vmem:[%s372 + $0x88] sm:$0xff] 0
        %2947 = vst [vmem:[%s372 + $0x90] sm:$0xff] 0
        %2948 = vst [vmem:[%s372 + $0x98] sm:$0xff] 0
        %2949 = vst [vmem:[%s372 + $0xa0] sm:$0xff] 0
        %2950 = vst [vmem:[%s372 + $0xa8] sm:$0xff] 0
        %2951 = vst [vmem:[%s372 + $0xb0] sm:$0xff] 0
        %2952 = vst [vmem:[%s372 + $0xb8] sm:$0xff] 0
        %2953 = vst [vmem:[%s372 + $0xc0] sm:$0xff] 0
        %2954 = vst [vmem:[%s372 + $0xc8] sm:$0xff] 0
        %2955 = vst [vmem:[%s372 + $0xd0] sm:$0xff] 0
        %2956 = vst [vmem:[%s372 + $0xd8] sm:$0xff] 0
        %2957 = vst [vmem:[%s372 + $0xe0] sm:$0xff] 0
        %2958 = vst [vmem:[%s372 + $0xe8] sm:$0xff] 0
        %2959 = vst [vmem:[%s372 + $0xf0] sm:$0xff] 0
        %2960 = vst [vmem:[%s372 + $0xf8] sm:$0xff] 0
      $region52: #{moe_mlp_forward.1} parent=35 // pred_fallthru
        _
      %s2961 = smul.u32 32, %s36
      %p2962 = scmp.lt.s32.totalorder %s2961, 159
      %s2963 = scalar_select %p2962, %s2961, 159
      %s2964 = smul.addr %s2963, 2
      %s2965 = smul.addr %s2964, 4
      %s2966 = scalar_lea.vmem %s7, %s2965
      // Predicated region
      $region53: #{moe_mlp_forward.1} parent=35 // pred_check
        %p2967 = pneg %p182
      $region54: #{moe_mlp_forward.1} parent=35 // pred_check_branch
        %2969 = sbr.rel (%p2967) target = $region56
      $region55: #{moe_mlp_forward.1} parent=35 // pred_region
        %s2970 = smul.u32 32, %s36
      $region56: #{moe_mlp_forward.1} parent=35 // pred_fallthru
        _
    $region36: #{moe_mlp_forward.1} parent=5 // pred_fallthru
      _
    %p2971 = scmp.le.s32.totalorder 2, %s27
    // Predicated region
    $region57: #{moe_mlp_forward.1} parent=5 // pred_check
      %p2972 = pneg %p2971
    $region58: #{moe_mlp_forward.1} parent=5 // pred_check_branch
      %2974 = sbr.rel (%p2972) target = $region60
    $region59: #{moe_mlp_forward.1} parent=5 // pred_region
      %s2975 = ssub.s32 %s27, 2
      // Predicated region
      $region61: #{moe_mlp_forward.1} parent=59 // pred_check
        %p2976 = pneg %p188
      $region62: #{moe_mlp_forward.1} parent=59 // pred_check_branch
        %2978 = sbr.rel (%p2976) target = $region64
      $region63: #{moe_mlp_forward.1} parent=59 // pred_region
        %s2979 = smul.u32 32, %s38
        %p2980 = scmp.lt.s32.totalorder %s2979, 159
        %s2981 = scalar_select %p2980, %s2979, 159
        %s2982 = smul.addr %s2981, 2
        %s2983 = smul.addr %s2982, 4
        %s2984 = scalar_lea.vmem %s7, %s2983
      $region64: #{moe_mlp_forward.1} parent=59 // pred_fallthru
        _
    $region60: #{moe_mlp_forward.1} parent=5 // pred_fallthru
      _
  $region6: #{moe_mlp_forward.1} parent=0 // loop_footer
    %s31 = sadd.s32 1, %s27
  $region7: #{moe_mlp_forward.1} parent=0 // loop_footer_branch
    %26 = sbr.rel target = $region3
  $region8: #{moe_mlp_forward.1} parent=0 // loop_exit
    _

</llo_original>
